<compile_context>
chip_gen: v6e
topology: v6e:2x2x1
jax: 0.10.0
libtpu: 0.0.40
codegen_flags: <defaults>
</compile_context>

<pallas_src>
import numpy as np

import jax
import jax.numpy as jnp
from jax.experimental import pallas as pl
from jax.experimental.pallas import tpu as pltpu

LANE = 128   # lane width of both parameter slabs
SUB = 8      # f32 sublane tile


def _r(n, m):
    return (n + m - 1) // m * m


# --------------------------------------------------------------------------------------
# Host-side parameter packing:
#   weights -> ONE bf16 (rows, 128) slab, gate pitch = H (r|z|n at lane 0 / H / 2H)
#   biases  -> ONE small f32 (rows, 128) slab, each bias row at an 8-aligned offset
# --------------------------------------------------------------------------------------
def pack_grunet_params(raw, *, input_dim, hidden_dim, mid_dim, output_dim, n_layers):
    H = hidden_dim
    C = _r(max(3 * H, mid_dim, output_dim, 1), LANE)
    assert 3 * H <= C and mid_dim <= C and output_dim <= C

    # ---- weight slab (bf16); every block starts at a 16-row (bf16 sublane-tile) offset
    off = {}
    row = 0

    def alloc(name, nrows):
        nonlocal row
        off[name] = row
        row += _r(nrows, 16)

    for l in range(n_layers):
        alloc(f"wx{l}", input_dim if l == 0 else H)   # W_ih^T, gate-packed at pitch H
    for l in range(n_layers):
        alloc(f"wh{l}", H)                            # W_hh^T, gate-packed at pitch H
    alloc("wd1", H)
    alloc("wd2", mid_dim)
    w_rows = _r(row, 16)

    wslab = np.zeros((w_rows, C), np.float32)
    n_bias = 2 * n_layers + 2
    bslab = np.zeros((n_bias * SUB, C), np.float32)   # one 8-row block per bias vector

    for l in range(n_layers):
        in_dim = input_dim if l == 0 else H
        wih = np.asarray(raw[f"wih{l}"], np.float32)  # (3H, in)
        whh = np.asarray(raw[f"whh{l}"], np.float32)  # (3H, H)
        bih = np.asarray(raw[f"bih{l}"], np.float32)  # (3H,)
        bhh = np.asarray(raw[f"bhh{l}"], np.float32)  # (3H,)
        for g in range(3):
            c = g * H
            wslab[off[f"wx{l}"]:off[f"wx{l}"] + in_dim, c:c + H] = wih[g * H:(g + 1) * H, :].T
            wslab[off[f"wh{l}"]:off[f"wh{l}"] + H,      c:c + H] = whh[g * H:(g + 1) * H, :].T
        # bias added to the x-projection: r/z get b_ih+b_hh pre-summed, n keeps b_ih.
        bslab[SUB * (2 * l), 0:H]           = bih[0:H] + bhh[0:H]
        bslab[SUB * (2 * l), H:2 * H]       = bih[H:2 * H] + bhh[H:2 * H]
        bslab[SUB * (2 * l), 2 * H:3 * H]   = bih[2 * H:3 * H]
        # bias added to the h-projection: only the n gate keeps b_hh (it sits inside r*(.)).
        bslab[SUB * (2 * l + 1), 2 * H:3 * H] = bhh[2 * H:3 * H]

    wslab[off["wd1"]:off["wd1"] + H,       0:mid_dim]    = np.asarray(raw["wd1"], np.float32).T
    wslab[off["wd2"]:off["wd2"] + mid_dim, 0:output_dim] = np.asarray(raw["wd2"], np.float32).T
    bslab[SUB * (2 * n_layers),     0:mid_dim]    = np.asarray(raw["bd1"], np.float32)
    bslab[SUB * (2 * n_layers + 1), 0:output_dim] = np.asarray(raw["bd2"], np.float32)

    layout = dict(off=off, input_dim=input_dim, hidden_dim=H, mid_dim=mid_dim,
                  output_dim=output_dim, n_layers=n_layers, lane=C)
    return jnp.asarray(wslab, jnp.bfloat16), jnp.asarray(bslab, jnp.float32), layout


# --------------------------------------------------------------------------------------
# Kernel
# --------------------------------------------------------------------------------------
def make_grunet_kernel(layout, *, training, p_drop):
    off = layout["off"]
    H = layout["hidden_dim"]
    input_dim = layout["input_dim"]
    mid = layout["mid_dim"]
    n_layers = layout["n_layers"]
    p0, p1 = p_drop

    def kernel(*refs):
        if training:
            x_ref, h_ref, w_ref, b_ref, u_ref, out_ref = refs
        else:
            x_ref, h_ref, w_ref, b_ref, out_ref = refs
            u_ref = None

        def bias(idx):
            # f32 bias row at an 8-aligned sublane offset; broadcasts over the batch tile.
            return b_ref[SUB * idx:SUB * idx + 1, :]

        # ---- stacked GRU cell, seq_len == 1 ----
        x_bf = x_ref[...]                                    # (Bt, in) bf16 (host-cast)
        h_new = None
        for l in range(n_layers):
            in_dim = input_dim if l == 0 else H
            h_prev = h_ref[l]                                # (Bt, H) f32
            rx, rh = off[f"wx{l}"], off[f"wh{l}"]
            gi = jnp.dot(x_bf, w_ref[rx:rx + in_dim, :],
                         preferred_element_type=jnp.float32) + bias(2 * l)
            gh = jnp.dot(h_prev.astype(jnp.bfloat16), w_ref[rh:rh + H, :],
                         preferred_element_type=jnp.float32) + bias(2 * l + 1)
            # Gates live at lane offsets 0 / H / 2H of the 128-wide projection.
            r = jax.nn.sigmoid(gi[:, 0:H] + gh[:, 0:H])
            z = jax.nn.sigmoid(gi[:, H:2 * H] + gh[:, H:2 * H])
            n = jnp.tanh(gi[:, 2 * H:3 * H] + r * gh[:, 2 * H:3 * H])
            h_new = (1.0 - z) * n + z * h_prev               # f32 blend on the VPU
            x_bf = h_new.astype(jnp.bfloat16)

        # ---- MLP head (out[:, -1] for seq_len==1 is the last layer's new hidden) ----
        out = h_new                                          # (Bt, H) f32
        if training and p0 > 0.0:
            out = out * jnp.where(u_ref[0][:, 0:H] >= p0, 1.0 / (1.0 - p0), 0.0)

        rd1 = off["wd1"]
        d1 = (jnp.dot(out.astype(jnp.bfloat16), w_ref[rd1:rd1 + H, :],
                      preferred_element_type=jnp.float32)[:, 0:mid]
              + bias(2 * n_layers)[:, 0:mid])
        out = jnp.maximum(d1, 0.0)

        if training and p1 > 0.0:
            out = out * jnp.where(u_ref[1][:, 0:mid] >= p1, 1.0 / (1.0 - p1), 0.0)

        rd2 = off["wd2"]
        # wd2 columns beyond output_dim are zero -> full 128-lane result, unmasked store.
        y = (jnp.dot(out.astype(jnp.bfloat16), w_ref[rd2:rd2 + mid, :],
                     preferred_element_type=jnp.float32)
             + bias(2 * n_layers + 1))
        out_ref[...] = y.astype(out_ref.dtype)

    return kernel


def grunet_forward(w_slab, b_slab, x, h, layout, *, training=False, dropout_u=None,
                   p_drop=(0.3, 0.2), batch_tile=128):
    if training and dropout_u is None:
        raise ValueError("training=True requires a host-generated dropout_u array")
    B = x.shape[0]
    C = layout["lane"]
    nl = layout["n_layers"]
    H = layout["hidden_dim"]
    bt = min(batch_tile, B)
    assert B % bt == 0 and bt % SUB == 0

    kernel = make_grunet_kernel(layout, training=training, p_drop=p_drop)

    const_map = lambda i: (0, 0)     # weight / bias slabs stay resident across the grid
    in_specs = [
        pl.BlockSpec((bt, layout["input_dim"]), lambda i: (i, 0)),
        pl.BlockSpec((nl, bt, H), lambda i: (0, i, 0)),
        pl.BlockSpec(w_slab.shape, const_map),
        pl.BlockSpec(b_slab.shape, const_map),
    ]
    args = [x.astype(jnp.bfloat16), h, w_slab, b_slab]
    if training:
        in_specs.append(pl.BlockSpec((2, bt, dropout_u.shape[-1]), lambda i: (0, i, 0)))
        args.append(dropout_u)

    y = pl.pallas_call(
        kernel,
        out_shape=jax.ShapeDtypeStruct((B, C), jnp.float32),
        grid=(B // bt,),
        in_specs=in_specs,
        out_specs=pl.BlockSpec((bt, C), lambda i: (i, 0)),
        compiler_params=pltpu.CompilerParams(dimension_semantics=("parallel",)),
    )(*args)
    return y[:, :layout["output_dim"]]   # host-side slice of the lane-padded output


# --------------------------------------------------------------------------------------
# Pure-JAX reference (torch-layout params).  Dot operands are cast to bf16 (f32
# accumulation) to mirror the kernel's MXU path.
# --------------------------------------------------------------------------------------
def grunet_reference(raw, x, h, *, n_layers, hidden_dim, training=False,
                     dropout_u=None, p_drop=(0.3, 0.2)):
    H = hidden_dim
    bf = jnp.bfloat16

    def bdot(a, w_t):
        return jnp.dot(a.astype(bf), w_t.astype(bf), preferred_element_type=jnp.float32)

    xcur = x
    for l in range(n_layers):
        gi = bdot(xcur, raw[f"wih{l}"].T) + raw[f"bih{l}"]
        gh = bdot(h[l], raw[f"whh{l}"].T) + raw[f"bhh{l}"]
        r = jax.nn.sigmoid(gi[:, 0:H] + gh[:, 0:H])
        z = jax.nn.sigmoid(gi[:, H:2 * H] + gh[:, H:2 * H])
        n = jnp.tanh(gi[:, 2 * H:3 * H] + r * gh[:, 2 * H:3 * H])
        xcur = (1.0 - z) * n + z * h[l]
    out = xcur
    if training:
        out = out * jnp.where(dropout_u[0][:, :H] >= p_drop[0], 1.0 / (1.0 - p_drop[0]), 0.0)
    out = jnp.maximum(bdot(out, raw["wd1"].T) + raw["bd1"], 0.0)
    if training:
        out = out * jnp.where(dropout_u[1][:, :out.shape[1]] >= p_drop[1],
                              1.0 / (1.0 - p_drop[1]), 0.0)
    return bdot(out, raw["wd2"].T) + raw["bd2"]


def init_raw_params(key, input_dim, hidden_dim, mid_dim, output_dim, n_layers):
    """nn.GRU / nn.Linear shaped params (torch (out,in) layout), uniform +-1/sqrt(fan)."""
    params = {}

    def unif(k, shape, bound):
        return jax.random.uniform(k, shape, jnp.float32, -bound, bound)

    b_gru = 1.0 / float(np.sqrt(hidden_dim))
    for l in range(n_layers):
        in_dim = input_dim if l == 0 else hidden_dim
        key, k1, k2, k3, k4 = jax.random.split(key, 5)
        params[f"wih{l}"] = unif(k1, (3 * hidden_dim, in_dim), b_gru)
        params[f"whh{l}"] = unif(k2, (3 * hidden_dim, hidden_dim), b_gru)
        params[f"bih{l}"] = unif(k3, (3 * hidden_dim,), b_gru)
        params[f"bhh{l}"] = unif(k4, (3 * hidden_dim,), b_gru)
    key, k1, k2, k3, k4 = jax.random.split(key, 5)
    b1 = 1.0 / float(np.sqrt(hidden_dim))
    b2 = 1.0 / float(np.sqrt(mid_dim))
    params["wd1"] = unif(k1, (mid_dim, hidden_dim), b1)
    params["bd1"] = unif(k2, (mid_dim,), b1)
    params["wd2"] = unif(k3, (output_dim, mid_dim), b2)
    params["bd2"] = unif(k4, (output_dim,), b2)
    return params


if __name__ == "__main__":
    INPUT_DIM = 16
    HIDDEN_DIM = 32      # 3*H = 96 <= 128 -> single-MXU-pass gate projections
    MID_DIM = 32
    OUTPUT_DIM = 8
    N_LAYERS = 2
    BATCH = 256          # >= 128 per perf review; tiled 128 rows / grid step

    root = jax.random.PRNGKey(0)
    k_param, k_x, k_h, k_u = jax.random.split(root, 4)

    raw = init_raw_params(k_param, INPUT_DIM, HIDDEN_DIM, MID_DIM, OUTPUT_DIM, N_LAYERS)
    w_slab, b_slab, layout = pack_grunet_params(
        raw, input_dim=INPUT_DIM, hidden_dim=HIDDEN_DIM, mid_dim=MID_DIM,
        output_dim=OUTPUT_DIM, n_layers=N_LAYERS)
    x = jax.random.normal(k_x, (BATCH, INPUT_DIM), jnp.float32)
    h = jax.random.normal(k_h, (N_LAYERS, BATCH, HIDDEN_DIM), jnp.float32)

    # ---- eval mode (default): no dropout anywhere ----
    y_eval = jax.block_until_ready(grunet_forward(w_slab, b_slab, x, h, layout))
    y_eval_ref = grunet_reference(raw, x, h, n_layers=N_LAYERS, hidden_dim=HIDDEN_DIM)
    assert y_eval.shape == (BATCH, OUTPUT_DIM)
    assert y_eval.dtype == jnp.float32
    assert bool(jnp.all(jnp.isfinite(y_eval)))
    assert bool(jnp.allclose(y_eval, y_eval_ref, rtol=1e-2, atol=1e-2))

    # ---- training mode: one host-generated uniform tile drives both dropout masks ----
    u = jax.random.uniform(k_u, (2, BATCH, LANE), jnp.float32)
    y_tr = jax.block_until_ready(
        grunet_forward(w_slab, b_slab, x, h, layout, training=True, dropout_u=u))
    y_tr_ref = grunet_reference(raw, x, h, n_layers=N_LAYERS, hidden_dim=HIDDEN_DIM,
                                training=True, dropout_u=u)
    assert bool(jnp.all(jnp.isfinite(y_tr)))
    assert bool(jnp.allclose(y_tr, y_tr_ref, rtol=1e-2, atol=1e-2))

    print("KERNEL_OK")
</pallas_src>

<mosaic_0001>
module attributes {stable_mosaic.version = 11 : i64} {
  func.func @kernel(%arg0: i32, %arg1: memref<128x16xbf16, #tpu.memory_space<vmem>>, %arg2: memref<2x128x32xf32, #tpu.memory_space<vmem>>, %arg3: memref<176x128xbf16, #tpu.memory_space<vmem>>, %arg4: memref<48x128xf32, #tpu.memory_space<vmem>>, %arg5: memref<128x128xf32, #tpu.memory_space<vmem>>) attributes {dimension_semantics = [#tpu.dimension_semantics<parallel>], iteration_bounds = array<i64: 2>, scalar_prefetch = 0 : i64, scratch_operands = 0 : i64, tpu.core_type = #tpu.core_type<tc>, window_params = [{transform_indices = @transform_0, window_bounds = array<i64: 128, 16>}, {transform_indices = @transform_1, window_bounds = array<i64: 2, 128, 32>}, {pipeline_mode = #tpu.pipeline_mode<synchronous>, transform_indices = @transform_2, window_bounds = array<i64: 176, 128>}, {pipeline_mode = #tpu.pipeline_mode<synchronous>, transform_indices = @transform_3, window_bounds = array<i64: 48, 128>}, {transform_indices = @transform_4, window_bounds = array<i64: 128, 128>}]} {
    %c0 = arith.constant 0 : index
    %c0_0 = arith.constant 0 : index
    %0 = vector.load %arg1[%c0, %c0_0] : memref<128x16xbf16, #tpu.memory_space<vmem>>, vector<128x16xbf16>
    %c0_1 = arith.constant 0 : index
    %c0_2 = arith.constant 0 : index
    %c0_3 = arith.constant 0 : index
    %1 = vector.load %arg2[%c0_1, %c0_2, %c0_3] : memref<2x128x32xf32, #tpu.memory_space<vmem>>, vector<1x128x32xf32>
    %2 = vector.shape_cast %1 : vector<1x128x32xf32> to vector<128x32xf32>
    %c0_4 = arith.constant 0 : index
    %c0_5 = arith.constant 0 : index
    %3 = vector.load %arg3[%c0_4, %c0_5] : memref<176x128xbf16, #tpu.memory_space<vmem>>, vector<16x128xbf16>
    %cst = arith.constant dense<0.000000e+00> : vector<128x128xf32>
    %4 = tpu.matmul %0, %3, %cst {dimension_numbers = #tpu.dot_dimension_numbers<[1], [0], [0], [1], [0, 0, 1, 1], [], []>} : vector<128x16xbf16>, vector<16x128xbf16>, vector<128x128xf32> -> vector<128x128xf32>
    %c0_6 = arith.constant 0 : index
    %c0_7 = arith.constant 0 : index
    %5 = vector.load %arg4[%c0_6, %c0_7] : memref<48x128xf32, #tpu.memory_space<vmem>>, vector<1x128xf32>
    %6 = vector.broadcast %5 : vector<1x128xf32> to vector<128x128xf32>
    %7 = arith.addf %4, %6 : vector<128x128xf32>
    %8 = arith.truncf %2 : vector<128x32xf32> to vector<128x32xbf16>
    %c48 = arith.constant 48 : index
    %c0_8 = arith.constant 0 : index
    %9 = vector.load %arg3[%c48, %c0_8] : memref<176x128xbf16, #tpu.memory_space<vmem>>, vector<32x128xbf16>
    %cst_9 = arith.constant dense<0.000000e+00> : vector<128x128xf32>
    %10 = tpu.matmul %8, %9, %cst_9 {dimension_numbers = #tpu.dot_dimension_numbers<[1], [0], [0], [1], [0, 0, 1, 1], [], []>} : vector<128x32xbf16>, vector<32x128xbf16>, vector<128x128xf32> -> vector<128x128xf32>
    %c8 = arith.constant 8 : index
    %c0_10 = arith.constant 0 : index
    %11 = vector.load %arg4[%c8, %c0_10] : memref<48x128xf32, #tpu.memory_space<vmem>>, vector<1x128xf32>
    %12 = vector.broadcast %11 : vector<1x128xf32> to vector<128x128xf32>
    %13 = arith.addf %10, %12 : vector<128x128xf32>
    %14 = vector.extract_strided_slice %7 {offsets = [0, 0], sizes = [128, 32], strides = [1, 1]} : vector<128x128xf32> to vector<128x32xf32>
    %15 = vector.extract_strided_slice %13 {offsets = [0, 0], sizes = [128, 32], strides = [1, 1]} : vector<128x128xf32> to vector<128x32xf32>
    %16 = arith.addf %14, %15 : vector<128x32xf32>
    %17 = arith.negf %16 : vector<128x32xf32>
    %18 = math.exp %17 : vector<128x32xf32>
    %cst_11 = arith.constant 1.000000e+00 : f32
    %19 = vector.broadcast %cst_11 : f32 to vector<128x32xf32>
    %20 = arith.addf %19, %18 : vector<128x32xf32>
    %21 = arith.divf %19, %20 : vector<128x32xf32>
    %22 = vector.extract_strided_slice %7 {offsets = [0, 32], sizes = [128, 32], strides = [1, 1]} : vector<128x128xf32> to vector<128x32xf32>
    %23 = vector.extract_strided_slice %13 {offsets = [0, 32], sizes = [128, 32], strides = [1, 1]} : vector<128x128xf32> to vector<128x32xf32>
    %24 = arith.addf %22, %23 : vector<128x32xf32>
    %25 = arith.negf %24 : vector<128x32xf32>
    %26 = math.exp %25 : vector<128x32xf32>
    %cst_12 = arith.constant 1.000000e+00 : f32
    %27 = vector.broadcast %cst_12 : f32 to vector<128x32xf32>
    %28 = arith.addf %27, %26 : vector<128x32xf32>
    %29 = arith.divf %27, %28 : vector<128x32xf32>
    %30 = vector.extract_strided_slice %7 {offsets = [0, 64], sizes = [128, 32], strides = [1, 1]} : vector<128x128xf32> to vector<128x32xf32>
    %31 = vector.extract_strided_slice %13 {offsets = [0, 64], sizes = [128, 32], strides = [1, 1]} : vector<128x128xf32> to vector<128x32xf32>
    %32 = arith.mulf %21, %31 : vector<128x32xf32>
    %33 = arith.addf %30, %32 : vector<128x32xf32>
    %34 = math.tanh %33 : vector<128x32xf32>
    %cst_13 = arith.constant 1.000000e+00 : f32
    %35 = vector.broadcast %cst_13 : f32 to vector<128x32xf32>
    %36 = arith.subf %35, %29 : vector<128x32xf32>
    %37 = arith.mulf %36, %34 : vector<128x32xf32>
    %38 = arith.mulf %29, %2 : vector<128x32xf32>
    %39 = arith.addf %37, %38 : vector<128x32xf32>
    %40 = arith.truncf %39 : vector<128x32xf32> to vector<128x32xbf16>
    %c1 = arith.constant 1 : index
    %c0_14 = arith.constant 0 : index
    %c0_15 = arith.constant 0 : index
    %41 = vector.load %arg2[%c1, %c0_14, %c0_15] : memref<2x128x32xf32, #tpu.memory_space<vmem>>, vector<1x128x32xf32>
    %42 = vector.shape_cast %41 : vector<1x128x32xf32> to vector<128x32xf32>
    %c16 = arith.constant 16 : index
    %c0_16 = arith.constant 0 : index
    %43 = vector.load %arg3[%c16, %c0_16] : memref<176x128xbf16, #tpu.memory_space<vmem>>, vector<32x128xbf16>
    %cst_17 = arith.constant dense<0.000000e+00> : vector<128x128xf32>
    %44 = tpu.matmul %40, %43, %cst_17 {dimension_numbers = #tpu.dot_dimension_numbers<[1], [0], [0], [1], [0, 0, 1, 1], [], []>} : vector<128x32xbf16>, vector<32x128xbf16>, vector<128x128xf32> -> vector<128x128xf32>
    %c16_18 = arith.constant 16 : index
    %c0_19 = arith.constant 0 : index
    %45 = vector.load %arg4[%c16_18, %c0_19] : memref<48x128xf32, #tpu.memory_space<vmem>>, vector<1x128xf32>
    %46 = vector.broadcast %45 : vector<1x128xf32> to vector<128x128xf32>
    %47 = arith.addf %44, %46 : vector<128x128xf32>
    %48 = arith.truncf %42 : vector<128x32xf32> to vector<128x32xbf16>
    %c80 = arith.constant 80 : index
    %c0_20 = arith.constant 0 : index
    %49 = vector.load %arg3[%c80, %c0_20] : memref<176x128xbf16, #tpu.memory_space<vmem>>, vector<32x128xbf16>
    %cst_21 = arith.constant dense<0.000000e+00> : vector<128x128xf32>
    %50 = tpu.matmul %48, %49, %cst_21 {dimension_numbers = #tpu.dot_dimension_numbers<[1], [0], [0], [1], [0, 0, 1, 1], [], []>} : vector<128x32xbf16>, vector<32x128xbf16>, vector<128x128xf32> -> vector<128x128xf32>
    %c24 = arith.constant 24 : index
    %c0_22 = arith.constant 0 : index
    %51 = vector.load %arg4[%c24, %c0_22] : memref<48x128xf32, #tpu.memory_space<vmem>>, vector<1x128xf32>
    %52 = vector.broadcast %51 : vector<1x128xf32> to vector<128x128xf32>
    %53 = arith.addf %50, %52 : vector<128x128xf32>
    %54 = vector.extract_strided_slice %47 {offsets = [0, 0], sizes = [128, 32], strides = [1, 1]} : vector<128x128xf32> to vector<128x32xf32>
    %55 = vector.extract_strided_slice %53 {offsets = [0, 0], sizes = [128, 32], strides = [1, 1]} : vector<128x128xf32> to vector<128x32xf32>
    %56 = arith.addf %54, %55 : vector<128x32xf32>
    %57 = arith.negf %56 : vector<128x32xf32>
    %58 = math.exp %57 : vector<128x32xf32>
    %cst_23 = arith.constant 1.000000e+00 : f32
    %59 = vector.broadcast %cst_23 : f32 to vector<128x32xf32>
    %60 = arith.addf %59, %58 : vector<128x32xf32>
    %61 = arith.divf %59, %60 : vector<128x32xf32>
    %62 = vector.extract_strided_slice %47 {offsets = [0, 32], sizes = [128, 32], strides = [1, 1]} : vector<128x128xf32> to vector<128x32xf32>
    %63 = vector.extract_strided_slice %53 {offsets = [0, 32], sizes = [128, 32], strides = [1, 1]} : vector<128x128xf32> to vector<128x32xf32>
    %64 = arith.addf %62, %63 : vector<128x32xf32>
    %65 = arith.negf %64 : vector<128x32xf32>
    %66 = math.exp %65 : vector<128x32xf32>
    %cst_24 = arith.constant 1.000000e+00 : f32
    %67 = vector.broadcast %cst_24 : f32 to vector<128x32xf32>
    %68 = arith.addf %67, %66 : vector<128x32xf32>
    %69 = arith.divf %67, %68 : vector<128x32xf32>
    %70 = vector.extract_strided_slice %47 {offsets = [0, 64], sizes = [128, 32], strides = [1, 1]} : vector<128x128xf32> to vector<128x32xf32>
    %71 = vector.extract_strided_slice %53 {offsets = [0, 64], sizes = [128, 32], strides = [1, 1]} : vector<128x128xf32> to vector<128x32xf32>
    %72 = arith.mulf %61, %71 : vector<128x32xf32>
    %73 = arith.addf %70, %72 : vector<128x32xf32>
    %74 = math.tanh %73 : vector<128x32xf32>
    %cst_25 = arith.constant 1.000000e+00 : f32
    %75 = vector.broadcast %cst_25 : f32 to vector<128x32xf32>
    %76 = arith.subf %75, %69 : vector<128x32xf32>
    %77 = arith.mulf %76, %74 : vector<128x32xf32>
    %78 = arith.mulf %69, %42 : vector<128x32xf32>
    %79 = arith.addf %77, %78 : vector<128x32xf32>
    %80 = arith.truncf %79 : vector<128x32xf32> to vector<128x32xbf16>
    %c112 = arith.constant 112 : index
    %c0_26 = arith.constant 0 : index
    %81 = vector.load %arg3[%c112, %c0_26] : memref<176x128xbf16, #tpu.memory_space<vmem>>, vector<32x128xbf16>
    %cst_27 = arith.constant dense<0.000000e+00> : vector<128x128xf32>
    %82 = tpu.matmul %80, %81, %cst_27 {dimension_numbers = #tpu.dot_dimension_numbers<[1], [0], [0], [1], [0, 0, 1, 1], [], []>} : vector<128x32xbf16>, vector<32x128xbf16>, vector<128x128xf32> -> vector<128x128xf32>
    %83 = vector.extract_strided_slice %82 {offsets = [0, 0], sizes = [128, 32], strides = [1, 1]} : vector<128x128xf32> to vector<128x32xf32>
    %c32 = arith.constant 32 : index
    %c0_28 = arith.constant 0 : index
    %84 = vector.load %arg4[%c32, %c0_28] : memref<48x128xf32, #tpu.memory_space<vmem>>, vector<1x128xf32>
    %85 = vector.extract_strided_slice %84 {offsets = [0, 0], sizes = [1, 32], strides = [1, 1]} : vector<1x128xf32> to vector<1x32xf32>
    %86 = vector.broadcast %85 : vector<1x32xf32> to vector<128x32xf32>
    %87 = arith.addf %83, %86 : vector<128x32xf32>
    %cst_29 = arith.constant 0.000000e+00 : f32
    %88 = vector.broadcast %cst_29 : f32 to vector<128x32xf32>
    %89 = arith.maximumf %87, %88 : vector<128x32xf32>
    %90 = arith.truncf %89 : vector<128x32xf32> to vector<128x32xbf16>
    %c144 = arith.constant 144 : index
    %c0_30 = arith.constant 0 : index
    %91 = vector.load %arg3[%c144, %c0_30] : memref<176x128xbf16, #tpu.memory_space<vmem>>, vector<32x128xbf16>
    %cst_31 = arith.constant dense<0.000000e+00> : vector<128x128xf32>
    %92 = tpu.matmul %90, %91, %cst_31 {dimension_numbers = #tpu.dot_dimension_numbers<[1], [0], [0], [1], [0, 0, 1, 1], [], []>} : vector<128x32xbf16>, vector<32x128xbf16>, vector<128x128xf32> -> vector<128x128xf32>
    %c40 = arith.constant 40 : index
    %c0_32 = arith.constant 0 : index
    %93 = vector.load %arg4[%c40, %c0_32] : memref<48x128xf32, #tpu.memory_space<vmem>>, vector<1x128xf32>
    %94 = vector.broadcast %93 : vector<1x128xf32> to vector<128x128xf32>
    %95 = arith.addf %92, %94 : vector<128x128xf32>
    %c0_33 = arith.constant 0 : index
    %c0_34 = arith.constant 0 : index
    %96 = vector.load %arg5[%c0_33, %c0_34] : memref<128x128xf32, #tpu.memory_space<vmem>>, vector<128x128xf32>
    tpu.vector_store %arg5[%c0_33, %c0_34], %95 {strides = array<i32>} : memref<128x128xf32, #tpu.memory_space<vmem>>, vector<128x128xf32>,
    return
  }
  func.func @transform_0(%arg0: i32) -> (i32, i32) {
    %c0_i32 = arith.constant 0 : i32
    %c0_i32_0 = arith.constant 0 : i32
    return %arg0, %c0_i32 : i32, i32
  }
  func.func @transform_1(%arg0: i32) -> (i32, i32, i32) {
    %c0_i32 = arith.constant 0 : i32
    %c0_i32_0 = arith.constant 0 : i32
    %c0_i32_1 = arith.constant 0 : i32
    return %c0_i32, %arg0, %c0_i32_0 : i32, i32, i32
  }
  func.func @transform_2(%arg0: i32) -> (i32, i32) {
    %c0_i32 = arith.constant 0 : i32
    %c0_i32_0 = arith.constant 0 : i32
    %c0_i32_1 = arith.constant 0 : i32
    return %c0_i32, %c0_i32_0 : i32, i32
  }
  func.func @transform_3(%arg0: i32) -> (i32, i32) {
    %c0_i32 = arith.constant 0 : i32
    %c0_i32_0 = arith.constant 0 : i32
    %c0_i32_1 = arith.constant 0 : i32
    return %c0_i32, %c0_i32_0 : i32, i32
  }
  func.func @transform_4(%arg0: i32) -> (i32, i32) {
    %c0_i32 = arith.constant 0 : i32
    %c0_i32_0 = arith.constant 0 : i32
    return %arg0, %c0_i32 : i32, i32
  }
}

</mosaic_0001>

<llo_original>
// kernel: tpu_custom_call.1
$region0: #{tpu_custom_call.1}
  #allocation0 [shape = 'u32[]', space=smem, size = 0x4, offset = 0x4, fixed_abs, tag = 'smem constant byte address 0x4 - core index']
  #allocation1 [shape = 'u32[144,128]{1,0:T(1,128)}', space=vmem, size = 0x12000, scoped, tag = 'internal scratch']
  %s0 = inlined_call_operand.vmem [shape: bf16[256,16], index: 0, kind: input, shape index: {}]
  %s1 = inlined_call_operand.vmem [shape: f32[2,256,32], index: 1, kind: input, shape index: {}]
  %s2 = inlined_call_operand.vmem [shape: bf16[176,128], index: 2, kind: input, shape index: {}]
  %s3 = inlined_call_operand.vmem [shape: f32[48,128], index: 3, kind: input, shape index: {}]
  %s4 = inlined_call_operand.hbm [shape: f32[256,128], index: 4, kind: output, shape index: {}]
  %s5 = sld [smem:[#allocation0]]
  $region87: #{tpu_custom_call.1} parent=0
    _
  %s7 = ssub.s32 1, %s5
  %s8 = scalar_select 0, %s7, %s5
  $region1: #{tpu_custom_call.1} parent=0
    #allocation2 [shape = 'u8[262144]{0}', space=vmem, size = 0x40000, scoped, tag = 'input window, operand 1']
    #allocation3 [shape = 'u8[131072]{0}', space=vmem, size = 0x20000, scoped, tag = 'output window, operand 0']
    #allocation4 [shape = 's32[2]{0}', space=sflag, size = 0x8, scoped, tag = 'scoped memory for tpu_custom_call.1']
    %9 = vsyncpa [#allocation4], 0
    %s10 = scalar_lea.sflag [#allocation4], 1
    %11 = vsyncpa %s10, 0
    loop: start=0, step=1, limit=4
    $region2: #{tpu_custom_call.1} parent=1 // loop_pre_header
      _
    $region3: #{tpu_custom_call.1} parent=1 // loop_header
      %s13 = sphi 0, %s17
      %p14 = scmp.ge.s32.totalorder %s13, 4
      %s23 = sphi 0, %s25
      %s26 = sphi 0, %s23
      %s27 = sphi 0, %s26
      %s43 = sphi 0, %s27
      %s49 = sphi 0, %s51
      %s52 = sphi 0, %s49
      %s53 = sphi 0, %s52
      %s69 = sphi 0, %s53
      %s73 = sphi 0, %s73
      %s75 = sphi 0, %s73
      %s76 = sphi 0, %s75
      %s90 = sphi 0, %s76
      %s94 = sphi 0, %s94
      %s96 = sphi 0, %s94
      %s97 = sphi 0, %s96
      %s111 = sphi 0, %s97
      %s117 = sphi 0, %s119
      %s120 = sphi 0, %s117
      %s121 = sphi 0, %s120
      %s137 = sphi 0, %s121
    $region4: #{tpu_custom_call.1} parent=1 // loop_header_branch
      %16 = sbr.rel (%p14) target = $region8
    $region5: #{tpu_custom_call.1} parent=1 // loop_body
      %s18 = ssub.s32 %s13, 1
      %s19 = ssub.s32 %s13, 2
      %s20 = sadd.s32 %s13, 1
      %s21 = ssub.s32 %s13, %s20
      %p22 = scmp.eq.s32.totalorder %s21, 0
      %s24 = sadd.s32 %s23, 1
      %s25 = scalar_select %p22, %s23, %s24
      %p28 = pneg %p22
      %p29 = scmp.eq.s32.totalorder %s13, 1
      %p30 = por %p28, %p29
      %p31 = scmp.ne.s32.totalorder %s23, %s26
      %p32 = scmp.eq.s32.totalorder %s13, 0
      %p33 = por %p31, %p32
      %p34 = scmp.ne.s32.totalorder %s23, %s26
      %p35 = scmp.eq.s32.totalorder %s18, 1
      %p36 = por %p34, %p35
      %p37 = scmp.ne.s32.totalorder %s26, %s27
      %p38 = scmp.eq.s32.totalorder %s18, 0
      %p39 = por %p37, %p38
      %p40 = scmp.ne.s32.totalorder %s26, %s27
      %p41 = scmp.eq.s32.totalorder %s19, 1
      %p42 = por %p40, %p41
      %p44 = scmp.ne.s32.totalorder %s27, %s43
      %p45 = scmp.eq.s32.totalorder %s19, 0
      %p46 = por %p44, %p45
      %s47 = ssub.s32 %s13, %s20
      %p48 = scmp.eq.s32.totalorder %s47, 0
      %s50 = sadd.s32 %s49, 1
      %s51 = scalar_select %p48, %s49, %s50
      %p54 = pneg %p48
      %p55 = scmp.eq.s32.totalorder %s13, 1
      %p56 = por %p54, %p55
      %p57 = scmp.ne.s32.totalorder %s49, %s52
      %p58 = scmp.eq.s32.totalorder %s13, 0
      %p59 = por %p57, %p58
      %p60 = scmp.ne.s32.totalorder %s49, %s52
      %p61 = scmp.eq.s32.totalorder %s18, 1
      %p62 = por %p60, %p61
      %p63 = scmp.ne.s32.totalorder %s52, %s53
      %p64 = scmp.eq.s32.totalorder %s18, 0
      %p65 = por %p63, %p64
      %p66 = scmp.ne.s32.totalorder %s52, %s53
      %p67 = scmp.eq.s32.totalorder %s19, 1
      %p68 = por %p66, %p67
      %p70 = scmp.ne.s32.totalorder %s53, %s69
      %p71 = scmp.eq.s32.totalorder %s19, 0
      %p72 = por %p70, %p71
      %s74 = sadd.s32 %s73, 1
      %p77 = scmp.eq.s32.totalorder %s13, 1
      %p78 = scmp.ne.s32.totalorder %s73, %s75
      %p79 = scmp.eq.s32.totalorder %s13, 0
      %p80 = por %p78, %p79
      %p81 = scmp.ne.s32.totalorder %s73, %s75
      %p82 = scmp.eq.s32.totalorder %s18, 1
      %p83 = por %p81, %p82
      %p84 = scmp.ne.s32.totalorder %s75, %s76
      %p85 = scmp.eq.s32.totalorder %s18, 0
      %p86 = por %p84, %p85
      %p87 = scmp.ne.s32.totalorder %s75, %s76
      %p88 = scmp.eq.s32.totalorder %s19, 1
      %p89 = por %p87, %p88
      %p91 = scmp.ne.s32.totalorder %s76, %s90
      %p92 = scmp.eq.s32.totalorder %s19, 0
      %p93 = por %p91, %p92
      %s95 = sadd.s32 %s94, 1
      %p98 = scmp.eq.s32.totalorder %s13, 1
      %p99 = scmp.ne.s32.totalorder %s94, %s96
      %p100 = scmp.eq.s32.totalorder %s13, 0
      %p101 = por %p99, %p100
      %p102 = scmp.ne.s32.totalorder %s94, %s96
      %p103 = scmp.eq.s32.totalorder %s18, 1
      %p104 = por %p102, %p103
      %p105 = scmp.ne.s32.totalorder %s96, %s97
      %p106 = scmp.eq.s32.totalorder %s18, 0
      %p107 = por %p105, %p106
      %p108 = scmp.ne.s32.totalorder %s96, %s97
      %p109 = scmp.eq.s32.totalorder %s19, 1
      %p110 = por %p108, %p109
      %p112 = scmp.ne.s32.totalorder %s97, %s111
      %p113 = scmp.eq.s32.totalorder %s19, 0
      %p114 = por %p112, %p113
      %s115 = ssub.s32 %s13, %s20
      %p116 = scmp.eq.s32.totalorder %s115, 0
      %s118 = sadd.s32 %s117, 1
      %s119 = scalar_select %p116, %s117, %s118
      %p122 = pneg %p116
      %p123 = scmp.eq.s32.totalorder %s13, 1
      %p124 = por %p122, %p123
      %p125 = scmp.ne.s32.totalorder %s117, %s120
      %p126 = scmp.eq.s32.totalorder %s13, 0
      %p127 = por %p125, %p126
      %p128 = scmp.ne.s32.totalorder %s117, %s120
      %p129 = scmp.eq.s32.totalorder %s18, 1
      %p130 = por %p128, %p129
      %p131 = scmp.ne.s32.totalorder %s120, %s121
      %p132 = scmp.eq.s32.totalorder %s18, 0
      %p133 = por %p131, %p132
      %p134 = scmp.ne.s32.totalorder %s120, %s121
      %p135 = scmp.eq.s32.totalorder %s19, 1
      %p136 = por %p134, %p135
      %p138 = scmp.ne.s32.totalorder %s121, %s137
      %p139 = scmp.eq.s32.totalorder %s19, 0
      %p140 = por %p138, %p139
      %p141 = scmp.le.s32.totalorder 1, %s13
      %p142 = scmp.lt.s32.totalorder %s13, 3
      %p143 = pnand %p141, %p142
      %p144 = pneg %p143
      // Predicated region
      $region9: #{tpu_custom_call.1} parent=5 // pred_check
        _
      $region10: #{tpu_custom_call.1} parent=5 // pred_check_branch
        %146 = sbr.rel (%p143) target = $region12
      $region11: #{tpu_custom_call.1} parent=5 // pred_region
        %s147 = ssub.s32 %s13, 1
        // Predicated region
        $region13: #{tpu_custom_call.1} parent=11 // pred_check
          %p148 = pneg %p86
        $region14: #{tpu_custom_call.1} parent=11 // pred_check_branch
          %150 = sbr.rel (%p148) target = $region16
        $region15: #{tpu_custom_call.1} parent=11 // pred_region
          _
        $region16: #{tpu_custom_call.1} parent=11 // pred_fallthru
          _
        // Predicated region
        $region17: #{tpu_custom_call.1} parent=11 // pred_check
          %p151 = pneg %p107
        $region18: #{tpu_custom_call.1} parent=11 // pred_check_branch
          %153 = sbr.rel (%p151) target = $region20
        $region19: #{tpu_custom_call.1} parent=11 // pred_region
          _
        $region20: #{tpu_custom_call.1} parent=11 // pred_fallthru
          _
      $region12: #{tpu_custom_call.1} parent=5 // pred_fallthru
        _
      %p154 = scmp.lt.s32.totalorder %s13, 2
      // Predicated region
      $region21: #{tpu_custom_call.1} parent=5 // pred_check
        %p155 = pneg %p154
      $region22: #{tpu_custom_call.1} parent=5 // pred_check_branch
        %157 = sbr.rel (%p155) target = $region24
      $region23: #{tpu_custom_call.1} parent=5 // pred_region
        // Predicated region
        $region25: #{tpu_custom_call.1} parent=23 // pred_check
          %p158 = pneg %p33
        $region26: #{tpu_custom_call.1} parent=23 // pred_check_branch
          %160 = sbr.rel (%p158) target = $region28
        $region27: #{tpu_custom_call.1} parent=23 // pred_region
          %s161 = smul.u32 16, %s13
          %p162 = scmp.lt.s32.totalorder %s161, 31
          %s163 = scalar_select %p162, %s161, 31
          %s164 = smul.addr %s163, 4
          %s165 = scalar_lea.vmem %s0, %s164
          %s166 = smul.u32 16, %s13
        $region28: #{tpu_custom_call.1} parent=23 // pred_fallthru
          _
        // Predicated region
        $region29: #{tpu_custom_call.1} parent=23 // pred_check
          %p167 = pneg %p59
        $region30: #{tpu_custom_call.1} parent=23 // pred_check_branch
          %169 = sbr.rel (%p167) target = $region32
        $region31: #{tpu_custom_call.1} parent=23 // pred_region
          %s170 = sand.u32 %s49, 1
          %s171 = sand.u32 %s49, 1
          %s172 = smul.addr %s171, 256
          %s173 = scalar_lea.vmem [#allocation2], %s172
          %s174 = smul.u32 16, %s13
          %s175 = smul.addr %s174, 8
          %s176 = scalar_lea.vmem %s1, %s175
          // Predicated region
          $region33: #{tpu_custom_call.1} parent=31 // pred_check
            _
          $region34: #{tpu_custom_call.1} parent=31 // pred_check_branch
            %178 = sbr.rel (0) target = $region36
          $region35: #{tpu_custom_call.1} parent=31 // pred_region
            // Predicated region
            $region37: #{tpu_custom_call.1} parent=35 // pred_check
              _
            $region38: #{tpu_custom_call.1} parent=35 // pred_check_branch
              %180 = sbr.rel (0) target = $region40
            $region39: #{tpu_custom_call.1} parent=35 // pred_region
              // Predicated region
              $region52: #{tpu_custom_call.1} parent=39 // pred_check
                _
              $region53: #{tpu_custom_call.1} parent=39 // pred_check_branch
                %258 = sbr.rel (0) target = $region55
              $region54: #{tpu_custom_call.1} parent=39 // pred_region
                loop: start=0, step=1, limit=1
                $region56: #{tpu_custom_call.1} parent=54 // loop_pre_header
                  _
                $region57: #{tpu_custom_call.1} parent=54 // loop_header
                  %s260 = sphi 0, %s264
                  %p261 = scmp.ge.s32.totalorder %s260, 1
                  %s265 = sphi %s176, %s176
                  %s266 = sphi %s173, %s173
                $region58: #{tpu_custom_call.1} parent=54 // loop_header_branch
                  %263 = sbr.rel (%p261) target = $region62
                $region59: #{tpu_custom_call.1} parent=54 // loop_body
                  %v267 = vld [vmem:[%s265] sm:$0xff]
                  %268 = vst [vmem:[%s266] sm:$0xff] %v267
                  %v269 = vld [vmem:[%s265 + $0x8] sm:$0xff]
                  %270 = vst [vmem:[%s266 + $0x8] sm:$0xff] %v269
                  %v271 = vld [vmem:[%s265 + $0x10] sm:$0xff]
                  %272 = vst [vmem:[%s266 + $0x10] sm:$0xff] %v271
                  %v273 = vld [vmem:[%s265 + $0x18] sm:$0xff]
                  %274 = vst [vmem:[%s266 + $0x18] sm:$0xff] %v273
                  %v275 = vld [vmem:[%s265 + $0x20] sm:$0xff]
                  %276 = vst [vmem:[%s266 + $0x20] sm:$0xff] %v275
                  %v277 = vld [vmem:[%s265 + $0x28] sm:$0xff]
                  %278 = vst [vmem:[%s266 + $0x28] sm:$0xff] %v277
                  %v279 = vld [vmem:[%s265 + $0x30] sm:$0xff]
                  %280 = vst [vmem:[%s266 + $0x30] sm:$0xff] %v279
                  %v281 = vld [vmem:[%s265 + $0x38] sm:$0xff]
                  %282 = vst [vmem:[%s266 + $0x38] sm:$0xff] %v281
                  %v283 = vld [vmem:[%s265 + $0x40] sm:$0xff]
                  %284 = vst [vmem:[%s266 + $0x40] sm:$0xff] %v283
                  %v285 = vld [vmem:[%s265 + $0x48] sm:$0xff]
                  %286 = vst [vmem:[%s266 + $0x48] sm:$0xff] %v285
                  %v287 = vld [vmem:[%s265 + $0x50] sm:$0xff]
                  %288 = vst [vmem:[%s266 + $0x50] sm:$0xff] %v287
                  %v289 = vld [vmem:[%s265 + $0x58] sm:$0xff]
                  %290 = vst [vmem:[%s266 + $0x58] sm:$0xff] %v289
                  %v291 = vld [vmem:[%s265 + $0x60] sm:$0xff]
                  %292 = vst [vmem:[%s266 + $0x60] sm:$0xff] %v291
                  %v293 = vld [vmem:[%s265 + $0x68] sm:$0xff]
                  %294 = vst [vmem:[%s266 + $0x68] sm:$0xff] %v293
                  %v295 = vld [vmem:[%s265 + $0x70] sm:$0xff]
                  %296 = vst [vmem:[%s266 + $0x70] sm:$0xff] %v295
                  %v297 = vld [vmem:[%s265 + $0x78] sm:$0xff]
                  %298 = vst [vmem:[%s266 + $0x78] sm:$0xff] %v297
                  %v299 = vld [vmem:[%s265 + $0x100] sm:$0xff]
                  %300 = vst [vmem:[%s266 + $0x80] sm:$0xff] %v299
                  %v301 = vld [vmem:[%s265 + $0x108] sm:$0xff]
                  %302 = vst [vmem:[%s266 + $0x88] sm:$0xff] %v301
                  %v303 = vld [vmem:[%s265 + $0x110] sm:$0xff]
                  %304 = vst [vmem:[%s266 + $0x90] sm:$0xff] %v303
                  %v305 = vld [vmem:[%s265 + $0x118] sm:$0xff]
                  %306 = vst [vmem:[%s266 + $0x98] sm:$0xff] %v305
                  %v307 = vld [vmem:[%s265 + $0x120] sm:$0xff]
                  %308 = vst [vmem:[%s266 + $0xa0] sm:$0xff] %v307
                  %v309 = vld [vmem:[%s265 + $0x128] sm:$0xff]
                  %310 = vst [vmem:[%s266 + $0xa8] sm:$0xff] %v309
                  %v311 = vld [vmem:[%s265 + $0x130] sm:$0xff]
                  %312 = vst [vmem:[%s266 + $0xb0] sm:$0xff] %v311
                  %v313 = vld [vmem:[%s265 + $0x138] sm:$0xff]
                  %314 = vst [vmem:[%s266 + $0xb8] sm:$0xff] %v313
                  %v315 = vld [vmem:[%s265 + $0x140] sm:$0xff]
                  %316 = vst [vmem:[%s266 + $0xc0] sm:$0xff] %v315
                  %v317 = vld [vmem:[%s265 + $0x148] sm:$0xff]
                  %318 = vst [vmem:[%s266 + $0xc8] sm:$0xff] %v317
                  %v319 = vld [vmem:[%s265 + $0x150] sm:$0xff]
                  %320 = vst [vmem:[%s266 + $0xd0] sm:$0xff] %v319
                  %v321 = vld [vmem:[%s265 + $0x158] sm:$0xff]
                  %322 = vst [vmem:[%s266 + $0xd8] sm:$0xff] %v321
                  %v323 = vld [vmem:[%s265 + $0x160] sm:$0xff]
                  %324 = vst [vmem:[%s266 + $0xe0] sm:$0xff] %v323
                  %v325 = vld [vmem:[%s265 + $0x168] sm:$0xff]
                  %326 = vst [vmem:[%s266 + $0xe8] sm:$0xff] %v325
                  %v327 = vld [vmem:[%s265 + $0x170] sm:$0xff]
                  %328 = vst [vmem:[%s266 + $0xf0] sm:$0xff] %v327
                  %v329 = vld [vmem:[%s265 + $0x178] sm:$0xff]
                  %330 = vst [vmem:[%s266 + $0xf8] sm:$0xff] %v329
                $region60: #{tpu_custom_call.1} parent=54 // loop_footer
                  %s264 = sadd.s32 1, %s260
                $region61: #{tpu_custom_call.1} parent=54 // loop_footer_branch
                  %259 = sbr.rel target = $region57
                $region62: #{tpu_custom_call.1} parent=54 // loop_exit
                  _
              $region55: #{tpu_custom_call.1} parent=39 // pred_fallthru
                _
              // Predicated region
              $region63: #{tpu_custom_call.1} parent=39 // pred_check
                _
              $region64: #{tpu_custom_call.1} parent=39 // pred_check_branch
                %332 = sbr.rel target = $region66
              $region65: #{tpu_custom_call.1} parent=39 // pred_region
                _
              $region66: #{tpu_custom_call.1} parent=39 // pred_fallthru
                _
            $region40: #{tpu_custom_call.1} parent=35 // pred_fallthru
              _
            // Predicated region
            $region41: #{tpu_custom_call.1} parent=35 // pred_check
              _
            $region42: #{tpu_custom_call.1} parent=35 // pred_check_branch
              %182 = sbr.rel target = $region44
            $region43: #{tpu_custom_call.1} parent=35 // pred_region
              %s184 = ssub.s32 256, 1
              loop: start=0, step=1, limit=1
              $region45: #{tpu_custom_call.1} parent=43 // loop_pre_header
                _
              $region46: #{tpu_custom_call.1} parent=43 // loop_header
                %s186 = sphi 0, %s190
                %p187 = scmp.ge.s32.totalorder %s186, 1
                %s191 = sphi %s176, %s176
                %s192 = sphi %s173, %s173
              $region47: #{tpu_custom_call.1} parent=43 // loop_header_branch
                %189 = sbr.rel (%p187) target = $region51
              $region48: #{tpu_custom_call.1} parent=43 // loop_body
                %v193 = vld [vmem:[%s191] sm:%s184]
                %194 = vst [vmem:[%s192] sm:%s184] %v193
                %v195 = vld [vmem:[%s191 + $0x8] sm:%s184]
                %196 = vst [vmem:[%s192 + $0x8] sm:%s184] %v195
                %v197 = vld [vmem:[%s191 + $0x10] sm:%s184]
                %198 = vst [vmem:[%s192 + $0x10] sm:%s184] %v197
                %v199 = vld [vmem:[%s191 + $0x18] sm:%s184]
                %200 = vst [vmem:[%s192 + $0x18] sm:%s184] %v199
                %v201 = vld [vmem:[%s191 + $0x20] sm:%s184]
                %202 = vst [vmem:[%s192 + $0x20] sm:%s184] %v201
                %v203 = vld [vmem:[%s191 + $0x28] sm:%s184]
                %204 = vst [vmem:[%s192 + $0x28] sm:%s184] %v203
                %v205 = vld [vmem:[%s191 + $0x30] sm:%s184]
                %206 = vst [vmem:[%s192 + $0x30] sm:%s184] %v205
                %v207 = vld [vmem:[%s191 + $0x38] sm:%s184]
                %208 = vst [vmem:[%s192 + $0x38] sm:%s184] %v207
                %v209 = vld [vmem:[%s191 + $0x40] sm:%s184]
                %210 = vst [vmem:[%s192 + $0x40] sm:%s184] %v209
                %v211 = vld [vmem:[%s191 + $0x48] sm:%s184]
                %212 = vst [vmem:[%s192 + $0x48] sm:%s184] %v211
                %v213 = vld [vmem:[%s191 + $0x50] sm:%s184]
                %214 = vst [vmem:[%s192 + $0x50] sm:%s184] %v213
                %v215 = vld [vmem:[%s191 + $0x58] sm:%s184]
                %216 = vst [vmem:[%s192 + $0x58] sm:%s184] %v215
                %v217 = vld [vmem:[%s191 + $0x60] sm:%s184]
                %218 = vst [vmem:[%s192 + $0x60] sm:%s184] %v217
                %v219 = vld [vmem:[%s191 + $0x68] sm:%s184]
                %220 = vst [vmem:[%s192 + $0x68] sm:%s184] %v219
                %v221 = vld [vmem:[%s191 + $0x70] sm:%s184]
                %222 = vst [vmem:[%s192 + $0x70] sm:%s184] %v221
                %v223 = vld [vmem:[%s191 + $0x78] sm:%s184]
                %224 = vst [vmem:[%s192 + $0x78] sm:%s184] %v223
                %v225 = vld [vmem:[%s191 + $0x100] sm:%s184]
                %226 = vst [vmem:[%s192 + $0x80] sm:%s184] %v225
                %v227 = vld [vmem:[%s191 + $0x108] sm:%s184]
                %228 = vst [vmem:[%s192 + $0x88] sm:%s184] %v227
                %v229 = vld [vmem:[%s191 + $0x110] sm:%s184]
                %230 = vst [vmem:[%s192 + $0x90] sm:%s184] %v229
                %v231 = vld [vmem:[%s191 + $0x118] sm:%s184]
                %232 = vst [vmem:[%s192 + $0x98] sm:%s184] %v231
                %v233 = vld [vmem:[%s191 + $0x120] sm:%s184]
                %234 = vst [vmem:[%s192 + $0xa0] sm:%s184] %v233
                %v235 = vld [vmem:[%s191 + $0x128] sm:%s184]
                %236 = vst [vmem:[%s192 + $0xa8] sm:%s184] %v235
                %v237 = vld [vmem:[%s191 + $0x130] sm:%s184]
                %238 = vst [vmem:[%s192 + $0xb0] sm:%s184] %v237
                %v239 = vld [vmem:[%s191 + $0x138] sm:%s184]
                %240 = vst [vmem:[%s192 + $0xb8] sm:%s184] %v239
                %v241 = vld [vmem:[%s191 + $0x140] sm:%s184]
                %242 = vst [vmem:[%s192 + $0xc0] sm:%s184] %v241
                %v243 = vld [vmem:[%s191 + $0x148] sm:%s184]
                %244 = vst [vmem:[%s192 + $0xc8] sm:%s184] %v243
                %v245 = vld [vmem:[%s191 + $0x150] sm:%s184]
                %246 = vst [vmem:[%s192 + $0xd0] sm:%s184] %v245
                %v247 = vld [vmem:[%s191 + $0x158] sm:%s184]
                %248 = vst [vmem:[%s192 + $0xd8] sm:%s184] %v247
                %v249 = vld [vmem:[%s191 + $0x160] sm:%s184]
                %250 = vst [vmem:[%s192 + $0xe0] sm:%s184] %v249
                %v251 = vld [vmem:[%s191 + $0x168] sm:%s184]
                %252 = vst [vmem:[%s192 + $0xe8] sm:%s184] %v251
                %v253 = vld [vmem:[%s191 + $0x170] sm:%s184]
                %254 = vst [vmem:[%s192 + $0xf0] sm:%s184] %v253
                %v255 = vld [vmem:[%s191 + $0x178] sm:%s184]
                %256 = vst [vmem:[%s192 + $0xf8] sm:%s184] %v255
              $region49: #{tpu_custom_call.1} parent=43 // loop_footer
                %s190 = sadd.s32 1, %s186
              $region50: #{tpu_custom_call.1} parent=43 // loop_footer_branch
                %185 = sbr.rel target = $region46
              $region51: #{tpu_custom_call.1} parent=43 // loop_exit
                _
            $region44: #{tpu_custom_call.1} parent=35 // pred_fallthru
              _
          $region36: #{tpu_custom_call.1} parent=31 // pred_fallthru
            _
          %333 = vnop
        $region32: #{tpu_custom_call.1} parent=23 // pred_fallthru
          _
      $region24: #{tpu_custom_call.1} parent=5 // pred_fallthru
        _
      %p334 = scmp.le.s32.totalorder 1, %s13
      %p335 = scmp.lt.s32.totalorder %s13, 3
      %p336 = pnand %p334, %p335
      %p337 = pneg %p336
      // Predicated region
      $region67: #{tpu_custom_call.1} parent=5 // pred_check
        _
      $region68: #{tpu_custom_call.1} parent=5 // pred_check_branch
        %339 = sbr.rel (%p336) target = $region70
      $region69: #{tpu_custom_call.1} parent=5 // pred_region
        %s340 = ssub.s32 %s13, 1
        %s341 = sand.u32 %s52, 1
        %s342 = sand.u32 %s52, 1
        %s343 = smul.addr %s342, 256
        %s344 = scalar_lea.vmem [#allocation2], %s343
        // Predicated region
        $region71: #{tpu_custom_call.1} parent=69 // pred_check
          %p345 = pneg %p65
        $region72: #{tpu_custom_call.1} parent=69 // pred_check_branch
          %347 = sbr.rel (%p345) target = $region74
        $region73: #{tpu_custom_call.1} parent=69 // pred_region
          _
        $region74: #{tpu_custom_call.1} parent=69 // pred_fallthru
          _
        %s348 = smul.u32 16, %s18
        %p349 = scmp.lt.s32.totalorder %s348, 31
        %s350 = scalar_select %p349, %s348, 31
        %s351 = smul.addr %s350, 4
        %s352 = scalar_lea.vmem %s0, %s351
        %p353 = pneg %p39
        %p354 = pneg %p36
        %s355 = sand.u32 %s52, 1
        %s356 = sand.u32 %s52, 1
        %s357 = smul.addr %s356, 256
        %s358 = scalar_lea.vmem [#allocation2], %s357
        %p359 = pneg %p65
        %p360 = pneg %p62
        %p361 = pneg %p86
        %p362 = pneg %p83
        %p363 = pneg %p107
        %p364 = pneg %p104
        %p365 = pneg %p133
        %p366 = pneg %p130
        %s367 = sand.u32 %s120, 1
        %s368 = scalar_lea.sflag [#allocation4], %s367
        %s369 = sand.u32 %s120, 1
        %s370 = smul.addr %s369, 128
        %s371 = scalar_lea.vmem [#allocation3], %s370
        %s372 = smul.u32 16, %s18
        %p373 = scmp.lt.s32.totalorder %s372, 31
        %s374 = scalar_select %p373, %s372, 31
        %s375 = smul.addr %s374, 4
        %s376 = scalar_lea.vmem %s0, %s375
        %s377 = smul.u32 16, %s18
        %s378 = smul.u32 16, %s18
        %s379 = smul.u32 16, %s18
        %v381 = vld [vmem:[%s376] sm:$0xf]
        %v382 = vld [vmem:[%s376 + $0x4] sm:$0xf]
        %v383 = vld [vmem:[%s376 + $0x8] sm:$0xf]
        %v384 = vld [vmem:[%s376 + $0xc] sm:$0xf]
        %v385 = vld [vmem:[%s376 + $0x10] sm:$0xf]
        %v386 = vld [vmem:[%s376 + $0x14] sm:$0xf]
        %v387 = vld [vmem:[%s376 + $0x18] sm:$0xf]
        %v388 = vld [vmem:[%s376 + $0x1c] sm:$0xf]
        %v389 = vld [vmem:[%s376 + $0x20] sm:$0xf]
        %v390 = vld [vmem:[%s376 + $0x24] sm:$0xf]
        %v391 = vld [vmem:[%s376 + $0x28] sm:$0xf]
        %v392 = vld [vmem:[%s376 + $0x2c] sm:$0xf]
        %v393 = vld [vmem:[%s376 + $0x30] sm:$0xf]
        %v394 = vld [vmem:[%s376 + $0x34] sm:$0xf]
        %v395 = vld [vmem:[%s376 + $0x38] sm:$0xf]
        %v396 = vld [vmem:[%s376 + $0x3c] sm:$0xf]
        %v397 = vld [vmem:[%s344] sm:$0xff]
        %v398 = vld [vmem:[%s344 + $0x8] sm:$0xff]
        %v399 = vld [vmem:[%s344 + $0x10] sm:$0xff]
        %v400 = vld [vmem:[%s344 + $0x18] sm:$0xff]
        %v401 = vld [vmem:[%s344 + $0x20] sm:$0xff]
        %v402 = vld [vmem:[%s344 + $0x28] sm:$0xff]
        %v403 = vld [vmem:[%s344 + $0x30] sm:$0xff]
        %v404 = vld [vmem:[%s344 + $0x38] sm:$0xff]
        %v405 = vld [vmem:[%s344 + $0x40] sm:$0xff]
        %v406 = vld [vmem:[%s344 + $0x48] sm:$0xff]
        %v407 = vld [vmem:[%s344 + $0x50] sm:$0xff]
        %v408 = vld [vmem:[%s344 + $0x58] sm:$0xff]
        %v409 = vld [vmem:[%s344 + $0x60] sm:$0xff]
        %v410 = vld [vmem:[%s344 + $0x68] sm:$0xff]
        %v411 = vld [vmem:[%s344 + $0x70] sm:$0xff]
        %v412 = vld [vmem:[%s344 + $0x78] sm:$0xff]
        %v413 = vld [vmem:[%s2] sm:$0xf]
        %v414 = vld [vmem:[%s2 + $0x4] sm:$0xf]
        %v415 = vld [vmem:[%s3] sm:$0x1]
        %v416 = vlaneseq
        %v417 = vshrl.u32 %v416, 7
        %v418 = vsub.s32 0, %v417
        %v419 = vrot.slane %v415, %v418
        %v436 = vunpack.c.l.b16 %v381
        %v437 = vunpack.c.l.b16 %v382
        %v438 = vunpack.c.l.b16 %v383
        %v439 = vunpack.c.l.b16 %v384
        %v440 = vunpack.c.l.b16 %v385
        %v441 = vunpack.c.l.b16 %v386
        %v442 = vunpack.c.l.b16 %v387
        %v443 = vunpack.c.l.b16 %v388
        %v444 = vunpack.c.l.b16 %v389
        %v445 = vunpack.c.l.b16 %v390
        %v446 = vunpack.c.l.b16 %v391
        %v447 = vunpack.c.l.b16 %v392
        %v448 = vunpack.c.l.b16 %v393
        %v449 = vunpack.c.l.b16 %v394
        %v450 = vunpack.c.l.b16 %v395
        %v451 = vunpack.c.l.b16 %v396
        %v452 = vpack.c.b16 %v437, %v436
        %v453 = vpack.c.b16 %v439, %v438
        %v454 = vpack.c.b16 %v441, %v440
        %v455 = vpack.c.b16 %v443, %v442
        %v456 = vpack.c.b16 %v445, %v444
        %v457 = vpack.c.b16 %v447, %v446
        %v458 = vpack.c.b16 %v449, %v448
        %v459 = vpack.c.b16 %v451, %v450
        %v462 = vunpack.c.l.b16 %v413
        %v463 = vunpack.c.l.b16 %v414
        %v464 = vpack.c.b16 %v463, %v462
        %vm466 = vcmask 130048
        %v468 = vsel %vm466, %v452, 0
        %v471 = vsel %vm466, %v453, 0
        %v474 = vsel %vm466, %v454, 0
        %v477 = vsel %vm466, %v455, 0
        %v480 = vsel %vm466, %v456, 0
        %v483 = vsel %vm466, %v457, 0
        %v486 = vsel %vm466, %v458, 0
        %v489 = vsel %vm466, %v459, 0
        %491 = vmatprep.subr.bf16.mxu0 0
        %492 = vmatpush1.bf16.msra.mxu0 0
        %493 = vmatprep.subr.bf16.mxu0 0
        %494 = vmatpush1.bf16.msra.mxu0 0
        %495 = vmatprep.subr.bf16.mxu0 0
        %496 = vmatpush1.bf16.msra.mxu0 0
        %497 = vmatprep.subr.bf16.mxu0 0
        %498 = vmatpush1.bf16.msra.mxu0 0
        %499 = vmatprep.subr.bf16.mxu0 0
        %500 = vmatpush1.bf16.msra.mxu0 0
        %501 = vmatprep.subr.bf16.mxu0 0
        %502 = vmatpush1.bf16.msra.mxu0 0
        %503 = vmatprep.subr.bf16.mxu0 0
        %504 = vmatpush1.bf16.msra.mxu0 0
        %505 = vmatprep.subr.bf16.mxu0 0
        %506 = vmatpush1.bf16.msra.mxu0 %v464
        %507 = vmatprep.subr.bf16.mxu0 0
        %508 = vmatpush2.bf16.msra.mxu0 0
        %509 = vmatprep.subr.bf16.mxu0 0
        %510 = vmatpush2.bf16.msra.mxu0 0
        %511 = vmatprep.subr.bf16.mxu0 0
        %512 = vmatpush2.bf16.msra.mxu0 0
        %513 = vmatprep.subr.bf16.mxu0 0
        %514 = vmatpush2.bf16.msra.mxu0 0
        %515 = vmatprep.subr.bf16.mxu0 0
        %516 = vmatpush2.bf16.msra.mxu0 0
        %517 = vmatprep.subr.bf16.mxu0 0
        %518 = vmatpush2.bf16.msra.mxu0 0
        %519 = vmatprep.subr.bf16.mxu0 0
        %520 = vmatpush2.bf16.msra.mxu0 0
        %521 = vmatprep.subr.bf16.mxu0 0
        %522 = vmatpush2.bf16.msra.mxu0 0
        %523 = vmatprep.mubr.bf16.mxu0 0
        %524 = vmatmul.mubr.bf16.gmra.mxu0 %v468
        %v525 = vpop.f32.mrf.mxu0
        %v526 = vadd.f32 %v419, %v525
        %v527 = vpop.f32.mrf.mxu0
        %v528 = vpop.f32.mrf.mxu0
        %v529 = vadd.f32 %v419, %v528
        %v530 = vpop.f32.mrf.mxu0
        %531 = vmatprep.mubr.bf16.mxu0 0
        %532 = vmatmul.mubr.bf16.gmra.mxu0 %v471
        %v533 = vpop.f32.mrf.mxu0
        %v534 = vadd.f32 %v419, %v533
        %v535 = vpop.f32.mrf.mxu0
        %v536 = vpop.f32.mrf.mxu0
        %v537 = vadd.f32 %v419, %v536
        %v538 = vpop.f32.mrf.mxu0
        %539 = vmatprep.mubr.bf16.mxu0 0
        %540 = vmatmul.mubr.bf16.gmra.mxu0 %v474
        %v541 = vpop.f32.mrf.mxu0
        %v542 = vadd.f32 %v419, %v541
        %v543 = vpop.f32.mrf.mxu0
        %v544 = vpop.f32.mrf.mxu0
        %v545 = vadd.f32 %v419, %v544
        %v546 = vpop.f32.mrf.mxu0
        %547 = vmatprep.mubr.bf16.mxu0 0
        %548 = vmatmul.mubr.bf16.gmra.mxu0 %v477
        %v549 = vpop.f32.mrf.mxu0
        %v550 = vadd.f32 %v419, %v549
        %v551 = vpop.f32.mrf.mxu0
        %v552 = vpop.f32.mrf.mxu0
        %v553 = vadd.f32 %v419, %v552
        %v554 = vpop.f32.mrf.mxu0
        %555 = vmatprep.mubr.bf16.mxu0 0
        %556 = vmatmul.mubr.bf16.gmra.mxu0 %v480
        %v557 = vpop.f32.mrf.mxu0
        %v558 = vadd.f32 %v419, %v557
        %v559 = vpop.f32.mrf.mxu0
        %v560 = vpop.f32.mrf.mxu0
        %v561 = vadd.f32 %v419, %v560
        %v562 = vpop.f32.mrf.mxu0
        %563 = vmatprep.mubr.bf16.mxu0 0
        %564 = vmatmul.mubr.bf16.gmra.mxu0 %v483
        %v565 = vpop.f32.mrf.mxu0
        %v566 = vadd.f32 %v419, %v565
        %v567 = vpop.f32.mrf.mxu0
        %v568 = vpop.f32.mrf.mxu0
        %v569 = vadd.f32 %v419, %v568
        %v570 = vpop.f32.mrf.mxu0
        %571 = vmatprep.mubr.bf16.mxu0 0
        %572 = vmatmul.mubr.bf16.gmra.mxu0 %v486
        %v573 = vpop.f32.mrf.mxu0
        %v574 = vadd.f32 %v419, %v573
        %v575 = vpop.f32.mrf.mxu0
        %v576 = vpop.f32.mrf.mxu0
        %v577 = vadd.f32 %v419, %v576
        %v578 = vpop.f32.mrf.mxu0
        %579 = vmatprep.mubr.bf16.mxu0 0
        %580 = vmatmul.mubr.bf16.gmra.mxu0 %v489
        %v581 = vpop.f32.mrf.mxu0
        %v582 = vadd.f32 %v419, %v581
        %v583 = vpop.f32.mrf.mxu0
        %v584 = vpop.f32.mrf.mxu0
        %v585 = vadd.f32 %v419, %v584
        %v586 = vpop.f32.mrf.mxu0
        %587 = vdwg.mxu0
        %v588 = vpack.c.bf16 %v398, %v397
        %v589 = vpack.c.bf16 %v400, %v399
        %v590 = vpack.c.bf16 %v402, %v401
        %v591 = vpack.c.bf16 %v404, %v403
        %v592 = vpack.c.bf16 %v406, %v405
        %v593 = vpack.c.bf16 %v408, %v407
        %v594 = vpack.c.bf16 %v410, %v409
        %v595 = vpack.c.bf16 %v412, %v411
        %v596 = vld [vmem:[%s2 + $0x18] sm:$0xf]
        %v597 = vld [vmem:[%s2 + $0x1c] sm:$0xf]
        %v598 = vld [vmem:[%s2 + $0x20] sm:$0xf]
        %v599 = vld [vmem:[%s2 + $0x24] sm:$0xf]
        %v600 = vld [vmem:[%s3 + $0x8] sm:$0x1]
        %v601 = vlaneseq
        %v602 = vshrl.u32 %v601, 7
        %v603 = vsub.s32 0, %v602
        %v604 = vrot.slane %v600, %v603
        %v609 = vunpack.c.l.b16 %v596
        %v610 = vunpack.c.l.b16 %v597
        %v611 = vunpack.c.l.b16 %v598
        %v612 = vunpack.c.l.b16 %v599
        %v613 = vpack.c.b16 %v610, %v609
        %v614 = vpack.c.b16 %v612, %v611
        %vm617 = vcmask 261120
        %v619 = vsel %vm617, %v588, 0
        %v622 = vsel %vm617, %v589, 0
        %v625 = vsel %vm617, %v590, 0
        %v628 = vsel %vm617, %v591, 0
        %v631 = vsel %vm617, %v592, 0
        %v634 = vsel %vm617, %v593, 0
        %v637 = vsel %vm617, %v594, 0
        %v640 = vsel %vm617, %v595, 0
        %642 = vmatprep.subr.bf16.mxu0 0
        %643 = vmatpush1.bf16.msra.mxu0 0
        %644 = vmatprep.subr.bf16.mxu0 0
        %645 = vmatpush1.bf16.msra.mxu0 0
        %646 = vmatprep.subr.bf16.mxu0 0
        %647 = vmatpush1.bf16.msra.mxu0 0
        %648 = vmatprep.subr.bf16.mxu0 0
        %649 = vmatpush1.bf16.msra.mxu0 0
        %650 = vmatprep.subr.bf16.mxu0 0
        %651 = vmatpush1.bf16.msra.mxu0 0
        %652 = vmatprep.subr.bf16.mxu0 0
        %653 = vmatpush1.bf16.msra.mxu0 0
        %654 = vmatprep.subr.bf16.mxu0 0
        %655 = vmatpush1.bf16.msra.mxu0 %v614
        %656 = vmatprep.subr.bf16.mxu0 0
        %657 = vmatpush1.bf16.msra.mxu0 %v613
        %658 = vmatprep.subr.bf16.mxu0 0
        %659 = vmatpush2.bf16.msra.mxu0 0
        %660 = vmatprep.subr.bf16.mxu0 0
        %661 = vmatpush2.bf16.msra.mxu0 0
        %662 = vmatprep.subr.bf16.mxu0 0
        %663 = vmatpush2.bf16.msra.mxu0 0
        %664 = vmatprep.subr.bf16.mxu0 0
        %665 = vmatpush2.bf16.msra.mxu0 0
        %666 = vmatprep.subr.bf16.mxu0 0
        %667 = vmatpush2.bf16.msra.mxu0 0
        %668 = vmatprep.subr.bf16.mxu0 0
        %669 = vmatpush2.bf16.msra.mxu0 0
        %670 = vmatprep.subr.bf16.mxu0 0
        %671 = vmatpush2.bf16.msra.mxu0 0
        %672 = vmatprep.subr.bf16.mxu0 0
        %673 = vmatpush2.bf16.msra.mxu0 0
        %674 = vmatprep.mubr.bf16.mxu0 0
        %675 = vmatmul.mubr.bf16.gmra.mxu0 %v619
        %v676 = vpop.f32.mrf.mxu0
        %v677 = vadd.f32 %v604, %v676
        %v678 = vpop.f32.mrf.mxu0
        %v679 = vpop.f32.mrf.mxu0
        %v680 = vadd.f32 %v604, %v679
        %v681 = vpop.f32.mrf.mxu0
        %682 = vmatprep.mubr.bf16.mxu0 0
        %683 = vmatmul.mubr.bf16.gmra.mxu0 %v622
        %v684 = vpop.f32.mrf.mxu0
        %v685 = vadd.f32 %v604, %v684
        %v686 = vpop.f32.mrf.mxu0
        %v687 = vpop.f32.mrf.mxu0
        %v688 = vadd.f32 %v604, %v687
        %v689 = vpop.f32.mrf.mxu0
        %690 = vmatprep.mubr.bf16.mxu0 0
        %691 = vmatmul.mubr.bf16.gmra.mxu0 %v625
        %v692 = vpop.f32.mrf.mxu0
        %v693 = vadd.f32 %v604, %v692
        %v694 = vpop.f32.mrf.mxu0
        %v695 = vpop.f32.mrf.mxu0
        %v696 = vadd.f32 %v604, %v695
        %v697 = vpop.f32.mrf.mxu0
        %698 = vmatprep.mubr.bf16.mxu0 0
        %699 = vmatmul.mubr.bf16.gmra.mxu0 %v628
        %v700 = vpop.f32.mrf.mxu0
        %v701 = vadd.f32 %v604, %v700
        %v702 = vpop.f32.mrf.mxu0
        %v703 = vpop.f32.mrf.mxu0
        %v704 = vadd.f32 %v604, %v703
        %v705 = vpop.f32.mrf.mxu0
        %706 = vmatprep.mubr.bf16.mxu0 0
        %707 = vmatmul.mubr.bf16.gmra.mxu0 %v631
        %v708 = vpop.f32.mrf.mxu0
        %v709 = vadd.f32 %v604, %v708
        %v710 = vpop.f32.mrf.mxu0
        %v711 = vpop.f32.mrf.mxu0
        %v712 = vadd.f32 %v604, %v711
        %v713 = vpop.f32.mrf.mxu0
        %714 = vmatprep.mubr.bf16.mxu0 0
        %715 = vmatmul.mubr.bf16.gmra.mxu0 %v634
        %v716 = vpop.f32.mrf.mxu0
        %v717 = vadd.f32 %v604, %v716
        %v718 = vpop.f32.mrf.mxu0
        %v719 = vpop.f32.mrf.mxu0
        %v720 = vadd.f32 %v604, %v719
        %v721 = vpop.f32.mrf.mxu0
        %722 = vmatprep.mubr.bf16.mxu0 0
        %723 = vmatmul.mubr.bf16.gmra.mxu0 %v637
        %v724 = vpop.f32.mrf.mxu0
        %v725 = vadd.f32 %v604, %v724
        %v726 = vpop.f32.mrf.mxu0
        %v727 = vpop.f32.mrf.mxu0
        %v728 = vadd.f32 %v604, %v727
        %v729 = vpop.f32.mrf.mxu0
        %730 = vmatprep.mubr.bf16.mxu0 0
        %731 = vmatmul.mubr.bf16.gmra.mxu0 %v640
        %v732 = vpop.f32.mrf.mxu0
        %v733 = vadd.f32 %v604, %v732
        %v734 = vpop.f32.mrf.mxu0
        %v735 = vpop.f32.mrf.mxu0
        %v736 = vadd.f32 %v604, %v735
        %v737 = vpop.f32.mrf.mxu0
        %738 = vdwg.mxu0
        %v739 = vadd.f32 %v526, %v677
        %v740 = vadd.f32 %v529, %v680
        %v741 = vadd.f32 %v534, %v685
        %v742 = vadd.f32 %v537, %v688
        %v743 = vadd.f32 %v542, %v693
        %v744 = vadd.f32 %v545, %v696
        %v745 = vadd.f32 %v550, %v701
        %v746 = vadd.f32 %v553, %v704
        %v747 = vadd.f32 %v558, %v709
        %v748 = vadd.f32 %v561, %v712
        %v749 = vadd.f32 %v566, %v717
        %v750 = vadd.f32 %v569, %v720
        %v751 = vadd.f32 %v574, %v725
        %v752 = vadd.f32 %v577, %v728
        %v753 = vadd.f32 %v582, %v733
        %v754 = vadd.f32 %v585, %v736
        %v755 = vxor.u32 %v739, 2147483648
        %v756 = vxor.u32 %v740, 2147483648
        %v757 = vxor.u32 %v741, 2147483648
        %v758 = vxor.u32 %v742, 2147483648
        %v759 = vxor.u32 %v743, 2147483648
        %v760 = vxor.u32 %v744, 2147483648
        %v761 = vxor.u32 %v745, 2147483648
        %v762 = vxor.u32 %v746, 2147483648
        %v763 = vxor.u32 %v747, 2147483648
        %v764 = vxor.u32 %v748, 2147483648
        %v765 = vxor.u32 %v749, 2147483648
        %v766 = vxor.u32 %v750, 2147483648
        %v767 = vxor.u32 %v751, 2147483648
        %v768 = vxor.u32 %v752, 2147483648
        %v769 = vxor.u32 %v753, 2147483648
        %v770 = vxor.u32 %v754, 2147483648
        %v771 = vmul.f32 %v755, 1.442695
        %v772 = vpow.pop %v771
        %v773 = vmul.f32 %v756, 1.442695
        %v774 = vpow.pop %v773
        %v775 = vmul.f32 %v757, 1.442695
        %v776 = vpow.pop %v775
        %v777 = vmul.f32 %v758, 1.442695
        %v778 = vpow.pop %v777
        %v779 = vmul.f32 %v759, 1.442695
        %v780 = vpow.pop %v779
        %v781 = vmul.f32 %v760, 1.442695
        %v782 = vpow.pop %v781
        %v783 = vmul.f32 %v761, 1.442695
        %v784 = vpow.pop %v783
        %v785 = vmul.f32 %v762, 1.442695
        %v786 = vpow.pop %v785
        %v787 = vmul.f32 %v763, 1.442695
        %v788 = vpow.pop %v787
        %v789 = vmul.f32 %v764, 1.442695
        %v790 = vpow.pop %v789
        %v791 = vmul.f32 %v765, 1.442695
        %v792 = vpow.pop %v791
        %v793 = vmul.f32 %v766, 1.442695
        %v794 = vpow.pop %v793
        %v795 = vmul.f32 %v767, 1.442695
        %v796 = vpow.pop %v795
        %v797 = vmul.f32 %v768, 1.442695
        %v798 = vpow.pop %v797
        %v799 = vmul.f32 %v769, 1.442695
        %v800 = vpow.pop %v799
        %v801 = vmul.f32 %v770, 1.442695
        %v802 = vpow.pop %v801
        %v803 = vadd.f32 %v772, 1.0
        %v804 = vadd.f32 %v774, 1.0
        %v805 = vadd.f32 %v776, 1.0
        %v806 = vadd.f32 %v778, 1.0
        %v807 = vadd.f32 %v780, 1.0
        %v808 = vadd.f32 %v782, 1.0
        %v809 = vadd.f32 %v784, 1.0
        %v810 = vadd.f32 %v786, 1.0
        %v811 = vadd.f32 %v788, 1.0
        %v812 = vadd.f32 %v790, 1.0
        %v813 = vadd.f32 %v792, 1.0
        %v814 = vadd.f32 %v794, 1.0
        %v815 = vadd.f32 %v796, 1.0
        %v816 = vadd.f32 %v798, 1.0
        %v817 = vadd.f32 %v800, 1.0
        %v818 = vadd.f32 %v802, 1.0
        %v819 = vrcp.pop %v803
        %v820 = vmul.f32 1.0, %v819
        %v821 = vrcp.pop %v804
        %v822 = vmul.f32 1.0, %v821
        %v823 = vrcp.pop %v805
        %v824 = vmul.f32 1.0, %v823
        %v825 = vrcp.pop %v806
        %v826 = vmul.f32 1.0, %v825
        %v827 = vrcp.pop %v807
        %v828 = vmul.f32 1.0, %v827
        %v829 = vrcp.pop %v808
        %v830 = vmul.f32 1.0, %v829
        %v831 = vrcp.pop %v809
        %v832 = vmul.f32 1.0, %v831
        %v833 = vrcp.pop %v810
        %v834 = vmul.f32 1.0, %v833
        %v835 = vrcp.pop %v811
        %v836 = vmul.f32 1.0, %v835
        %v837 = vrcp.pop %v812
        %v838 = vmul.f32 1.0, %v837
        %v839 = vrcp.pop %v813
        %v840 = vmul.f32 1.0, %v839
        %v841 = vrcp.pop %v814
        %v842 = vmul.f32 1.0, %v841
        %v843 = vrcp.pop %v815
        %v844 = vmul.f32 1.0, %v843
        %v845 = vrcp.pop %v816
        %v846 = vmul.f32 1.0, %v845
        %v847 = vrcp.pop %v817
        %v848 = vmul.f32 1.0, %v847
        %v849 = vrcp.pop %v818
        %v850 = vmul.f32 1.0, %v849
        %867 = vrot.lane.b32.xlu0 %v677, 64
        %v868 = vpop.permute.xlu0 %867
        %869 = vrot.lane.b32.xlu0 %v680, 64
        %v870 = vpop.permute.xlu0 %869
        %871 = vrot.lane.b32.xlu0 %v685, 64
        %v872 = vpop.permute.xlu0 %871
        %873 = vrot.lane.b32.xlu0 %v688, 64
        %v874 = vpop.permute.xlu0 %873
        %875 = vrot.lane.b32.xlu0 %v693, 64
        %v876 = vpop.permute.xlu0 %875
        %877 = vrot.lane.b32.xlu0 %v696, 64
        %v878 = vpop.permute.xlu0 %877
        %879 = vrot.lane.b32.xlu0 %v701, 64
        %v880 = vpop.permute.xlu0 %879
        %881 = vrot.lane.b32.xlu0 %v704, 64
        %v882 = vpop.permute.xlu0 %881
        %883 = vrot.lane.b32.xlu0 %v709, 64
        %v884 = vpop.permute.xlu0 %883
        %885 = vrot.lane.b32.xlu0 %v712, 64
        %v886 = vpop.permute.xlu0 %885
        %887 = vrot.lane.b32.xlu0 %v717, 64
        %v888 = vpop.permute.xlu0 %887
        %889 = vrot.lane.b32.xlu0 %v720, 64
        %v890 = vpop.permute.xlu0 %889
        %891 = vrot.lane.b32.xlu0 %v725, 64
        %v892 = vpop.permute.xlu0 %891
        %893 = vrot.lane.b32.xlu0 %v728, 64
        %v894 = vpop.permute.xlu0 %893
        %895 = vrot.lane.b32.xlu0 %v733, 64
        %v896 = vpop.permute.xlu0 %895
        %897 = vrot.lane.b32.xlu0 %v736, 64
        %v898 = vpop.permute.xlu0 %897
        %v915 = vmul.f32 %v820, %v868
        %v916 = vmul.f32 %v822, %v870
        %v917 = vmul.f32 %v824, %v872
        %v918 = vmul.f32 %v826, %v874
        %v919 = vmul.f32 %v828, %v876
        %v920 = vmul.f32 %v830, %v878
        %v921 = vmul.f32 %v832, %v880
        %v922 = vmul.f32 %v834, %v882
        %v923 = vmul.f32 %v836, %v884
        %v924 = vmul.f32 %v838, %v886
        %v925 = vmul.f32 %v840, %v888
        %v926 = vmul.f32 %v842, %v890
        %v927 = vmul.f32 %v844, %v892
        %v928 = vmul.f32 %v846, %v894
        %v929 = vmul.f32 %v848, %v896
        %v930 = vmul.f32 %v850, %v898
        %947 = vrot.lane.b32.xlu0 %v915, 64
        %v948 = vpop.permute.xlu0 %947
        %949 = vrot.lane.b32.xlu0 %v916, 64
        %v950 = vpop.permute.xlu0 %949
        %951 = vrot.lane.b32.xlu0 %v917, 64
        %v952 = vpop.permute.xlu0 %951
        %953 = vrot.lane.b32.xlu0 %v918, 64
        %v954 = vpop.permute.xlu0 %953
        %955 = vrot.lane.b32.xlu0 %v919, 64
        %v956 = vpop.permute.xlu0 %955
        %957 = vrot.lane.b32.xlu0 %v920, 64
        %v958 = vpop.permute.xlu0 %957
        %959 = vrot.lane.b32.xlu0 %v921, 64
        %v960 = vpop.permute.xlu0 %959
        %961 = vrot.lane.b32.xlu0 %v922, 64
        %v962 = vpop.permute.xlu0 %961
        %963 = vrot.lane.b32.xlu0 %v923, 64
        %v964 = vpop.permute.xlu0 %963
        %965 = vrot.lane.b32.xlu0 %v924, 64
        %v966 = vpop.permute.xlu0 %965
        %967 = vrot.lane.b32.xlu0 %v925, 64
        %v968 = vpop.permute.xlu0 %967
        %969 = vrot.lane.b32.xlu0 %v926, 64
        %v970 = vpop.permute.xlu0 %969
        %971 = vrot.lane.b32.xlu0 %v927, 64
        %v972 = vpop.permute.xlu0 %971
        %973 = vrot.lane.b32.xlu0 %v928, 64
        %v974 = vpop.permute.xlu0 %973
        %975 = vrot.lane.b32.xlu0 %v929, 64
        %v976 = vpop.permute.xlu0 %975
        %977 = vrot.lane.b32.xlu0 %v930, 64
        %v978 = vpop.permute.xlu0 %977
        %v995 = vadd.f32 %v526, %v948
        %v996 = vadd.f32 %v529, %v950
        %v997 = vadd.f32 %v534, %v952
        %v998 = vadd.f32 %v537, %v954
        %v999 = vadd.f32 %v542, %v956
        %v1000 = vadd.f32 %v545, %v958
        %v1001 = vadd.f32 %v550, %v960
        %v1002 = vadd.f32 %v553, %v962
        %v1003 = vadd.f32 %v558, %v964
        %v1004 = vadd.f32 %v561, %v966
        %v1005 = vadd.f32 %v566, %v968
        %v1006 = vadd.f32 %v569, %v970
        %v1007 = vadd.f32 %v574, %v972
        %v1008 = vadd.f32 %v577, %v974
        %v1009 = vadd.f32 %v582, %v976
        %v1010 = vadd.f32 %v585, %v978
        %v1011 = vtanh.pop %v995
        %v1012 = vtanh.pop %v996
        %v1013 = vtanh.pop %v997
        %v1014 = vtanh.pop %v998
        %v1015 = vtanh.pop %v999
        %v1016 = vtanh.pop %v1000
        %v1017 = vtanh.pop %v1001
        %v1018 = vtanh.pop %v1002
        %v1019 = vtanh.pop %v1003
        %v1020 = vtanh.pop %v1004
        %v1021 = vtanh.pop %v1005
        %v1022 = vtanh.pop %v1006
        %v1023 = vtanh.pop %v1007
        %v1024 = vtanh.pop %v1008
        %v1025 = vtanh.pop %v1009
        %v1026 = vtanh.pop %v1010
        %v1027 = vsub.f32 1.0, %v820
        %v1028 = vsub.f32 1.0, %v822
        %v1029 = vsub.f32 1.0, %v824
        %v1030 = vsub.f32 1.0, %v826
        %v1031 = vsub.f32 1.0, %v828
        %v1032 = vsub.f32 1.0, %v830
        %v1033 = vsub.f32 1.0, %v832
        %v1034 = vsub.f32 1.0, %v834
        %v1035 = vsub.f32 1.0, %v836
        %v1036 = vsub.f32 1.0, %v838
        %v1037 = vsub.f32 1.0, %v840
        %v1038 = vsub.f32 1.0, %v842
        %v1039 = vsub.f32 1.0, %v844
        %v1040 = vsub.f32 1.0, %v846
        %v1041 = vsub.f32 1.0, %v848
        %v1042 = vsub.f32 1.0, %v850
        %1059 = vrot.lane.b32.xlu0 %v1011, 96
        %v1060 = vpop.permute.xlu0 %1059
        %1061 = vrot.lane.b32.xlu0 %v1012, 96
        %v1062 = vpop.permute.xlu0 %1061
        %1063 = vrot.lane.b32.xlu0 %v1013, 96
        %v1064 = vpop.permute.xlu0 %1063
        %1065 = vrot.lane.b32.xlu0 %v1014, 96
        %v1066 = vpop.permute.xlu0 %1065
        %1067 = vrot.lane.b32.xlu0 %v1015, 96
        %v1068 = vpop.permute.xlu0 %1067
        %1069 = vrot.lane.b32.xlu0 %v1016, 96
        %v1070 = vpop.permute.xlu0 %1069
        %1071 = vrot.lane.b32.xlu0 %v1017, 96
        %v1072 = vpop.permute.xlu0 %1071
        %1073 = vrot.lane.b32.xlu0 %v1018, 96
        %v1074 = vpop.permute.xlu0 %1073
        %1075 = vrot.lane.b32.xlu0 %v1019, 96
        %v1076 = vpop.permute.xlu0 %1075
        %1077 = vrot.lane.b32.xlu0 %v1020, 96
        %v1078 = vpop.permute.xlu0 %1077
        %1079 = vrot.lane.b32.xlu0 %v1021, 96
        %v1080 = vpop.permute.xlu0 %1079
        %1081 = vrot.lane.b32.xlu0 %v1022, 96
        %v1082 = vpop.permute.xlu0 %1081
        %1083 = vrot.lane.b32.xlu0 %v1023, 96
        %v1084 = vpop.permute.xlu0 %1083
        %1085 = vrot.lane.b32.xlu0 %v1024, 96
        %v1086 = vpop.permute.xlu0 %1085
        %1087 = vrot.lane.b32.xlu0 %v1025, 96
        %v1088 = vpop.permute.xlu0 %1087
        %1089 = vrot.lane.b32.xlu0 %v1026, 96
        %v1090 = vpop.permute.xlu0 %1089
        %v1107 = vmul.f32 %v1027, %v1060
        %v1108 = vmul.f32 %v1028, %v1062
        %v1109 = vmul.f32 %v1029, %v1064
        %v1110 = vmul.f32 %v1030, %v1066
        %v1111 = vmul.f32 %v1031, %v1068
        %v1112 = vmul.f32 %v1032, %v1070
        %v1113 = vmul.f32 %v1033, %v1072
        %v1114 = vmul.f32 %v1034, %v1074
        %v1115 = vmul.f32 %v1035, %v1076
        %v1116 = vmul.f32 %v1036, %v1078
        %v1117 = vmul.f32 %v1037, %v1080
        %v1118 = vmul.f32 %v1038, %v1082
        %v1119 = vmul.f32 %v1039, %v1084
        %v1120 = vmul.f32 %v1040, %v1086
        %v1121 = vmul.f32 %v1041, %v1088
        %v1122 = vmul.f32 %v1042, %v1090
        %1139 = vrot.lane.b32.xlu0 %v397, 32
        %v1140 = vpop.permute.xlu0 %1139
        %1141 = vrot.lane.b32.xlu0 %v398, 32
        %v1142 = vpop.permute.xlu0 %1141
        %1143 = vrot.lane.b32.xlu0 %v399, 32
        %v1144 = vpop.permute.xlu0 %1143
        %1145 = vrot.lane.b32.xlu0 %v400, 32
        %v1146 = vpop.permute.xlu0 %1145
        %1147 = vrot.lane.b32.xlu0 %v401, 32
        %v1148 = vpop.permute.xlu0 %1147
        %1149 = vrot.lane.b32.xlu0 %v402, 32
        %v1150 = vpop.permute.xlu0 %1149
        %1151 = vrot.lane.b32.xlu0 %v403, 32
        %v1152 = vpop.permute.xlu0 %1151
        %1153 = vrot.lane.b32.xlu0 %v404, 32
        %v1154 = vpop.permute.xlu0 %1153
        %1155 = vrot.lane.b32.xlu0 %v405, 32
        %v1156 = vpop.permute.xlu0 %1155
        %1157 = vrot.lane.b32.xlu0 %v406, 32
        %v1158 = vpop.permute.xlu0 %1157
        %1159 = vrot.lane.b32.xlu0 %v407, 32
        %v1160 = vpop.permute.xlu0 %1159
        %1161 = vrot.lane.b32.xlu0 %v408, 32
        %v1162 = vpop.permute.xlu0 %1161
        %1163 = vrot.lane.b32.xlu0 %v409, 32
        %v1164 = vpop.permute.xlu0 %1163
        %1165 = vrot.lane.b32.xlu0 %v410, 32
        %v1166 = vpop.permute.xlu0 %1165
        %1167 = vrot.lane.b32.xlu0 %v411, 32
        %v1168 = vpop.permute.xlu0 %1167
        %1169 = vrot.lane.b32.xlu0 %v412, 32
        %v1170 = vpop.permute.xlu0 %1169
        %v1187 = vmul.f32 %v820, %v1140
        %v1188 = vmul.f32 %v822, %v1142
        %v1189 = vmul.f32 %v824, %v1144
        %v1190 = vmul.f32 %v826, %v1146
        %v1191 = vmul.f32 %v828, %v1148
        %v1192 = vmul.f32 %v830, %v1150
        %v1193 = vmul.f32 %v832, %v1152
        %v1194 = vmul.f32 %v834, %v1154
        %v1195 = vmul.f32 %v836, %v1156
        %v1196 = vmul.f32 %v838, %v1158
        %v1197 = vmul.f32 %v840, %v1160
        %v1198 = vmul.f32 %v842, %v1162
        %v1199 = vmul.f32 %v844, %v1164
        %v1200 = vmul.f32 %v846, %v1166
        %v1201 = vmul.f32 %v848, %v1168
        %v1202 = vmul.f32 %v850, %v1170
        %v1203 = vadd.f32 %v1107, %v1187
        %v1204 = vadd.f32 %v1108, %v1188
        %v1205 = vadd.f32 %v1109, %v1189
        %v1206 = vadd.f32 %v1110, %v1190
        %v1207 = vadd.f32 %v1111, %v1191
        %v1208 = vadd.f32 %v1112, %v1192
        %v1209 = vadd.f32 %v1113, %v1193
        %v1210 = vadd.f32 %v1114, %v1194
        %v1211 = vadd.f32 %v1115, %v1195
        %v1212 = vadd.f32 %v1116, %v1196
        %v1213 = vadd.f32 %v1117, %v1197
        %v1214 = vadd.f32 %v1118, %v1198
        %v1215 = vadd.f32 %v1119, %v1199
        %v1216 = vadd.f32 %v1120, %v1200
        %v1217 = vadd.f32 %v1121, %v1201
        %v1218 = vadd.f32 %v1122, %v1202
        %v1219 = vpack.c.bf16 %v1204, %v1203
        %v1220 = vpack.c.bf16 %v1206, %v1205
        %v1221 = vpack.c.bf16 %v1208, %v1207
        %v1222 = vpack.c.bf16 %v1210, %v1209
        %v1223 = vpack.c.bf16 %v1212, %v1211
        %v1224 = vpack.c.bf16 %v1214, %v1213
        %v1225 = vpack.c.bf16 %v1216, %v1215
        %v1226 = vpack.c.bf16 %v1218, %v1217
        %s1227 = scalar_lea.vmem %s344, 128 [#allocation2]
        %v1228 = vld [vmem:[%s1227] sm:$0xff]
        %v1229 = vld [vmem:[%s1227 + $0x8] sm:$0xff]
        %v1230 = vld [vmem:[%s1227 + $0x10] sm:$0xff]
        %v1231 = vld [vmem:[%s1227 + $0x18] sm:$0xff]
        %v1232 = vld [vmem:[%s1227 + $0x20] sm:$0xff]
        %v1233 = vld [vmem:[%s1227 + $0x28] sm:$0xff]
        %v1234 = vld [vmem:[%s1227 + $0x30] sm:$0xff]
        %v1235 = vld [vmem:[%s1227 + $0x38] sm:$0xff]
        %v1236 = vld [vmem:[%s1227 + $0x40] sm:$0xff]
        %v1237 = vld [vmem:[%s1227 + $0x48] sm:$0xff]
        %v1238 = vld [vmem:[%s1227 + $0x50] sm:$0xff]
        %v1239 = vld [vmem:[%s1227 + $0x58] sm:$0xff]
        %v1240 = vld [vmem:[%s1227 + $0x60] sm:$0xff]
        %v1241 = vld [vmem:[%s1227 + $0x68] sm:$0xff]
        %v1242 = vld [vmem:[%s1227 + $0x70] sm:$0xff]
        %v1243 = vld [vmem:[%s1227 + $0x78] sm:$0xff]
        %v1244 = vld [vmem:[%s2 + $0x8] sm:$0xf]
        %v1245 = vld [vmem:[%s2 + $0xc] sm:$0xf]
        %v1246 = vld [vmem:[%s2 + $0x10] sm:$0xf]
        %v1247 = vld [vmem:[%s2 + $0x14] sm:$0xf]
        %v1248 = vld [vmem:[%s3 + $0x10] sm:$0x1]
        %v1249 = vlaneseq
        %v1250 = vshrl.u32 %v1249, 7
        %v1251 = vsub.s32 0, %v1250
        %v1252 = vrot.slane %v1248, %v1251
        %1261 = vrot.lane.b32.xlu0 %v1219, 96
        %v1262 = vpop.permute.xlu0 %1261
        %1263 = vrot.lane.b32.xlu0 %v1220, 96
        %v1264 = vpop.permute.xlu0 %1263
        %1265 = vrot.lane.b32.xlu0 %v1221, 96
        %v1266 = vpop.permute.xlu0 %1265
        %1267 = vrot.lane.b32.xlu0 %v1222, 96
        %v1268 = vpop.permute.xlu0 %1267
        %1269 = vrot.lane.b32.xlu0 %v1223, 96
        %v1270 = vpop.permute.xlu0 %1269
        %1271 = vrot.lane.b32.xlu0 %v1224, 96
        %v1272 = vpop.permute.xlu0 %1271
        %1273 = vrot.lane.b32.xlu0 %v1225, 96
        %v1274 = vpop.permute.xlu0 %1273
        %1275 = vrot.lane.b32.xlu0 %v1226, 96
        %v1276 = vpop.permute.xlu0 %1275
        %v1281 = vunpack.c.l.b16 %v1244
        %v1282 = vunpack.c.l.b16 %v1245
        %v1283 = vunpack.c.l.b16 %v1246
        %v1284 = vunpack.c.l.b16 %v1247
        %v1285 = vpack.c.b16 %v1282, %v1281
        %v1286 = vpack.c.b16 %v1284, %v1283
        %v1290 = vsel %vm617, %v1262, 0
        %v1293 = vsel %vm617, %v1264, 0
        %v1296 = vsel %vm617, %v1266, 0
        %v1299 = vsel %vm617, %v1268, 0
        %v1302 = vsel %vm617, %v1270, 0
        %v1305 = vsel %vm617, %v1272, 0
        %v1308 = vsel %vm617, %v1274, 0
        %v1311 = vsel %vm617, %v1276, 0
        %1313 = vmatprep.subr.bf16.mxu0 0
        %1314 = vmatpush1.bf16.msra.mxu0 0
        %1315 = vmatprep.subr.bf16.mxu0 0
        %1316 = vmatpush1.bf16.msra.mxu0 0
        %1317 = vmatprep.subr.bf16.mxu0 0
        %1318 = vmatpush1.bf16.msra.mxu0 0
        %1319 = vmatprep.subr.bf16.mxu0 0
        %1320 = vmatpush1.bf16.msra.mxu0 0
        %1321 = vmatprep.subr.bf16.mxu0 0
        %1322 = vmatpush1.bf16.msra.mxu0 0
        %1323 = vmatprep.subr.bf16.mxu0 0
        %1324 = vmatpush1.bf16.msra.mxu0 0
        %1325 = vmatprep.subr.bf16.mxu0 0
        %1326 = vmatpush1.bf16.msra.mxu0 %v1286
        %1327 = vmatprep.subr.bf16.mxu0 0
        %1328 = vmatpush1.bf16.msra.mxu0 %v1285
        %1329 = vmatprep.subr.bf16.mxu0 0
        %1330 = vmatpush2.bf16.msra.mxu0 0
        %1331 = vmatprep.subr.bf16.mxu0 0
        %1332 = vmatpush2.bf16.msra.mxu0 0
        %1333 = vmatprep.subr.bf16.mxu0 0
        %1334 = vmatpush2.bf16.msra.mxu0 0
        %1335 = vmatprep.subr.bf16.mxu0 0
        %1336 = vmatpush2.bf16.msra.mxu0 0
        %1337 = vmatprep.subr.bf16.mxu0 0
        %1338 = vmatpush2.bf16.msra.mxu0 0
        %1339 = vmatprep.subr.bf16.mxu0 0
        %1340 = vmatpush2.bf16.msra.mxu0 0
        %1341 = vmatprep.subr.bf16.mxu0 0
        %1342 = vmatpush2.bf16.msra.mxu0 0
        %1343 = vmatprep.subr.bf16.mxu0 0
        %1344 = vmatpush2.bf16.msra.mxu0 0
        %1345 = vmatprep.mubr.bf16.mxu0 0
        %1346 = vmatmul.mubr.bf16.gmra.mxu0 %v1290
        %v1347 = vpop.f32.mrf.mxu0
        %v1348 = vadd.f32 %v1252, %v1347
        %v1349 = vpop.f32.mrf.mxu0
        %v1350 = vpop.f32.mrf.mxu0
        %v1351 = vadd.f32 %v1252, %v1350
        %v1352 = vpop.f32.mrf.mxu0
        %1353 = vmatprep.mubr.bf16.mxu0 0
        %1354 = vmatmul.mubr.bf16.gmra.mxu0 %v1293
        %v1355 = vpop.f32.mrf.mxu0
        %v1356 = vadd.f32 %v1252, %v1355
        %v1357 = vpop.f32.mrf.mxu0
        %v1358 = vpop.f32.mrf.mxu0
        %v1359 = vadd.f32 %v1252, %v1358
        %v1360 = vpop.f32.mrf.mxu0
        %1361 = vmatprep.mubr.bf16.mxu0 0
        %1362 = vmatmul.mubr.bf16.gmra.mxu0 %v1296
        %v1363 = vpop.f32.mrf.mxu0
        %v1364 = vadd.f32 %v1252, %v1363
        %v1365 = vpop.f32.mrf.mxu0
        %v1366 = vpop.f32.mrf.mxu0
        %v1367 = vadd.f32 %v1252, %v1366
        %v1368 = vpop.f32.mrf.mxu0
        %1369 = vmatprep.mubr.bf16.mxu0 0
        %1370 = vmatmul.mubr.bf16.gmra.mxu0 %v1299
        %v1371 = vpop.f32.mrf.mxu0
        %v1372 = vadd.f32 %v1252, %v1371
        %v1373 = vpop.f32.mrf.mxu0
        %v1374 = vpop.f32.mrf.mxu0
        %v1375 = vadd.f32 %v1252, %v1374
        %v1376 = vpop.f32.mrf.mxu0
        %1377 = vmatprep.mubr.bf16.mxu0 0
        %1378 = vmatmul.mubr.bf16.gmra.mxu0 %v1302
        %v1379 = vpop.f32.mrf.mxu0
        %v1380 = vadd.f32 %v1252, %v1379
        %v1381 = vpop.f32.mrf.mxu0
        %v1382 = vpop.f32.mrf.mxu0
        %v1383 = vadd.f32 %v1252, %v1382
        %v1384 = vpop.f32.mrf.mxu0
        %1385 = vmatprep.mubr.bf16.mxu0 0
        %1386 = vmatmul.mubr.bf16.gmra.mxu0 %v1305
        %v1387 = vpop.f32.mrf.mxu0
        %v1388 = vadd.f32 %v1252, %v1387
        %v1389 = vpop.f32.mrf.mxu0
        %v1390 = vpop.f32.mrf.mxu0
        %v1391 = vadd.f32 %v1252, %v1390
        %v1392 = vpop.f32.mrf.mxu0
        %1393 = vmatprep.mubr.bf16.mxu0 0
        %1394 = vmatmul.mubr.bf16.gmra.mxu0 %v1308
        %v1395 = vpop.f32.mrf.mxu0
        %v1396 = vadd.f32 %v1252, %v1395
        %v1397 = vpop.f32.mrf.mxu0
        %v1398 = vpop.f32.mrf.mxu0
        %v1399 = vadd.f32 %v1252, %v1398
        %v1400 = vpop.f32.mrf.mxu0
        %1401 = vmatprep.mubr.bf16.mxu0 0
        %1402 = vmatmul.mubr.bf16.gmra.mxu0 %v1311
        %v1403 = vpop.f32.mrf.mxu0
        %v1404 = vadd.f32 %v1252, %v1403
        %v1405 = vpop.f32.mrf.mxu0
        %v1406 = vpop.f32.mrf.mxu0
        %v1407 = vadd.f32 %v1252, %v1406
        %v1408 = vpop.f32.mrf.mxu0
        %1409 = vdwg.mxu0
        %v1410 = vpack.c.bf16 %v1229, %v1228
        %v1411 = vpack.c.bf16 %v1231, %v1230
        %v1412 = vpack.c.bf16 %v1233, %v1232
        %v1413 = vpack.c.bf16 %v1235, %v1234
        %v1414 = vpack.c.bf16 %v1237, %v1236
        %v1415 = vpack.c.bf16 %v1239, %v1238
        %v1416 = vpack.c.bf16 %v1241, %v1240
        %v1417 = vpack.c.bf16 %v1243, %v1242
        %v1418 = vld [vmem:[%s2 + $0x28] sm:$0xf]
        %v1419 = vld [vmem:[%s2 + $0x2c] sm:$0xf]
        %v1420 = vld [vmem:[%s2 + $0x30] sm:$0xf]
        %v1421 = vld [vmem:[%s2 + $0x34] sm:$0xf]
        %v1422 = vld [vmem:[%s3 + $0x18] sm:$0x1]
        %v1423 = vlaneseq
        %v1424 = vshrl.u32 %v1423, 7
        %v1425 = vsub.s32 0, %v1424
        %v1426 = vrot.slane %v1422, %v1425
        %v1431 = vunpack.c.l.b16 %v1418
        %v1432 = vunpack.c.l.b16 %v1419
        %v1433 = vunpack.c.l.b16 %v1420
        %v1434 = vunpack.c.l.b16 %v1421
        %v1435 = vpack.c.b16 %v1432, %v1431
        %v1436 = vpack.c.b16 %v1434, %v1433
        %v1440 = vsel %vm617, %v1410, 0
        %v1443 = vsel %vm617, %v1411, 0
        %v1446 = vsel %vm617, %v1412, 0
        %v1449 = vsel %vm617, %v1413, 0
        %v1452 = vsel %vm617, %v1414, 0
        %v1455 = vsel %vm617, %v1415, 0
        %v1458 = vsel %vm617, %v1416, 0
        %v1461 = vsel %vm617, %v1417, 0
        %1463 = vmatprep.subr.bf16.mxu0 0
        %1464 = vmatpush1.bf16.msra.mxu0 0
        %1465 = vmatprep.subr.bf16.mxu0 0
        %1466 = vmatpush1.bf16.msra.mxu0 0
        %1467 = vmatprep.subr.bf16.mxu0 0
        %1468 = vmatpush1.bf16.msra.mxu0 0
        %1469 = vmatprep.subr.bf16.mxu0 0
        %1470 = vmatpush1.bf16.msra.mxu0 0
        %1471 = vmatprep.subr.bf16.mxu0 0
        %1472 = vmatpush1.bf16.msra.mxu0 0
        %1473 = vmatprep.subr.bf16.mxu0 0
        %1474 = vmatpush1.bf16.msra.mxu0 0
        %1475 = vmatprep.subr.bf16.mxu0 0
        %1476 = vmatpush1.bf16.msra.mxu0 %v1436
        %1477 = vmatprep.subr.bf16.mxu0 0
        %1478 = vmatpush1.bf16.msra.mxu0 %v1435
        %1479 = vmatprep.subr.bf16.mxu0 0
        %1480 = vmatpush2.bf16.msra.mxu0 0
        %1481 = vmatprep.subr.bf16.mxu0 0
        %1482 = vmatpush2.bf16.msra.mxu0 0
        %1483 = vmatprep.subr.bf16.mxu0 0
        %1484 = vmatpush2.bf16.msra.mxu0 0
        %1485 = vmatprep.subr.bf16.mxu0 0
        %1486 = vmatpush2.bf16.msra.mxu0 0
        %1487 = vmatprep.subr.bf16.mxu0 0
        %1488 = vmatpush2.bf16.msra.mxu0 0
        %1489 = vmatprep.subr.bf16.mxu0 0
        %1490 = vmatpush2.bf16.msra.mxu0 0
        %1491 = vmatprep.subr.bf16.mxu0 0
        %1492 = vmatpush2.bf16.msra.mxu0 0
        %1493 = vmatprep.subr.bf16.mxu0 0
        %1494 = vmatpush2.bf16.msra.mxu0 0
        %1495 = vmatprep.mubr.bf16.mxu0 0
        %1496 = vmatmul.mubr.bf16.gmra.mxu0 %v1440
        %v1497 = vpop.f32.mrf.mxu0
        %v1498 = vadd.f32 %v1426, %v1497
        %v1499 = vpop.f32.mrf.mxu0
        %v1500 = vpop.f32.mrf.mxu0
        %v1501 = vadd.f32 %v1426, %v1500
        %v1502 = vpop.f32.mrf.mxu0
        %1503 = vmatprep.mubr.bf16.mxu0 0
        %1504 = vmatmul.mubr.bf16.gmra.mxu0 %v1443
        %v1505 = vpop.f32.mrf.mxu0
        %v1506 = vadd.f32 %v1426, %v1505
        %v1507 = vpop.f32.mrf.mxu0
        %v1508 = vpop.f32.mrf.mxu0
        %v1509 = vadd.f32 %v1426, %v1508
        %v1510 = vpop.f32.mrf.mxu0
        %1511 = vmatprep.mubr.bf16.mxu0 0
        %1512 = vmatmul.mubr.bf16.gmra.mxu0 %v1446
        %v1513 = vpop.f32.mrf.mxu0
        %v1514 = vadd.f32 %v1426, %v1513
        %v1515 = vpop.f32.mrf.mxu0
        %v1516 = vpop.f32.mrf.mxu0
        %v1517 = vadd.f32 %v1426, %v1516
        %v1518 = vpop.f32.mrf.mxu0
        %1519 = vmatprep.mubr.bf16.mxu0 0
        %1520 = vmatmul.mubr.bf16.gmra.mxu0 %v1449
        %v1521 = vpop.f32.mrf.mxu0
        %v1522 = vadd.f32 %v1426, %v1521
        %v1523 = vpop.f32.mrf.mxu0
        %v1524 = vpop.f32.mrf.mxu0
        %v1525 = vadd.f32 %v1426, %v1524
        %v1526 = vpop.f32.mrf.mxu0
        %1527 = vmatprep.mubr.bf16.mxu0 0
        %1528 = vmatmul.mubr.bf16.gmra.mxu0 %v1452
        %v1529 = vpop.f32.mrf.mxu0
        %v1530 = vadd.f32 %v1426, %v1529
        %v1531 = vpop.f32.mrf.mxu0
        %v1532 = vpop.f32.mrf.mxu0
        %v1533 = vadd.f32 %v1426, %v1532
        %v1534 = vpop.f32.mrf.mxu0
        %1535 = vmatprep.mubr.bf16.mxu0 0
        %1536 = vmatmul.mubr.bf16.gmra.mxu0 %v1455
        %v1537 = vpop.f32.mrf.mxu0
        %v1538 = vadd.f32 %v1426, %v1537
        %v1539 = vpop.f32.mrf.mxu0
        %v1540 = vpop.f32.mrf.mxu0
        %v1541 = vadd.f32 %v1426, %v1540
        %v1542 = vpop.f32.mrf.mxu0
        %1543 = vmatprep.mubr.bf16.mxu0 0
        %1544 = vmatmul.mubr.bf16.gmra.mxu0 %v1458
        %v1545 = vpop.f32.mrf.mxu0
        %v1546 = vadd.f32 %v1426, %v1545
        %v1547 = vpop.f32.mrf.mxu0
        %v1548 = vpop.f32.mrf.mxu0
        %v1549 = vadd.f32 %v1426, %v1548
        %v1550 = vpop.f32.mrf.mxu0
        %1551 = vmatprep.mubr.bf16.mxu0 0
        %1552 = vmatmul.mubr.bf16.gmra.mxu0 %v1461
        %v1553 = vpop.f32.mrf.mxu0
        %v1554 = vadd.f32 %v1426, %v1553
        %v1555 = vpop.f32.mrf.mxu0
        %v1556 = vpop.f32.mrf.mxu0
        %v1557 = vadd.f32 %v1426, %v1556
        %v1558 = vpop.f32.mrf.mxu0
        %1559 = vdwg.mxu0
        %v1560 = vadd.f32 %v1348, %v1498
        %v1561 = vadd.f32 %v1351, %v1501
        %v1562 = vadd.f32 %v1356, %v1506
        %v1563 = vadd.f32 %v1359, %v1509
        %v1564 = vadd.f32 %v1364, %v1514
        %v1565 = vadd.f32 %v1367, %v1517
        %v1566 = vadd.f32 %v1372, %v1522
        %v1567 = vadd.f32 %v1375, %v1525
        %v1568 = vadd.f32 %v1380, %v1530
        %v1569 = vadd.f32 %v1383, %v1533
        %v1570 = vadd.f32 %v1388, %v1538
        %v1571 = vadd.f32 %v1391, %v1541
        %v1572 = vadd.f32 %v1396, %v1546
        %v1573 = vadd.f32 %v1399, %v1549
        %v1574 = vadd.f32 %v1404, %v1554
        %v1575 = vadd.f32 %v1407, %v1557
        %v1576 = vxor.u32 %v1560, 2147483648
        %v1577 = vxor.u32 %v1561, 2147483648
        %v1578 = vxor.u32 %v1562, 2147483648
        %v1579 = vxor.u32 %v1563, 2147483648
        %v1580 = vxor.u32 %v1564, 2147483648
        %v1581 = vxor.u32 %v1565, 2147483648
        %v1582 = vxor.u32 %v1566, 2147483648
        %v1583 = vxor.u32 %v1567, 2147483648
        %v1584 = vxor.u32 %v1568, 2147483648
        %v1585 = vxor.u32 %v1569, 2147483648
        %v1586 = vxor.u32 %v1570, 2147483648
        %v1587 = vxor.u32 %v1571, 2147483648
        %v1588 = vxor.u32 %v1572, 2147483648
        %v1589 = vxor.u32 %v1573, 2147483648
        %v1590 = vxor.u32 %v1574, 2147483648
        %v1591 = vxor.u32 %v1575, 2147483648
        %v1592 = vmul.f32 %v1576, 1.442695
        %v1593 = vpow.pop %v1592
        %v1594 = vmul.f32 %v1577, 1.442695
        %v1595 = vpow.pop %v1594
        %v1596 = vmul.f32 %v1578, 1.442695
        %v1597 = vpow.pop %v1596
        %v1598 = vmul.f32 %v1579, 1.442695
        %v1599 = vpow.pop %v1598
        %v1600 = vmul.f32 %v1580, 1.442695
        %v1601 = vpow.pop %v1600
        %v1602 = vmul.f32 %v1581, 1.442695
        %v1603 = vpow.pop %v1602
        %v1604 = vmul.f32 %v1582, 1.442695
        %v1605 = vpow.pop %v1604
        %v1606 = vmul.f32 %v1583, 1.442695
        %v1607 = vpow.pop %v1606
        %v1608 = vmul.f32 %v1584, 1.442695
        %v1609 = vpow.pop %v1608
        %v1610 = vmul.f32 %v1585, 1.442695
        %v1611 = vpow.pop %v1610
        %v1612 = vmul.f32 %v1586, 1.442695
        %v1613 = vpow.pop %v1612
        %v1614 = vmul.f32 %v1587, 1.442695
        %v1615 = vpow.pop %v1614
        %v1616 = vmul.f32 %v1588, 1.442695
        %v1617 = vpow.pop %v1616
        %v1618 = vmul.f32 %v1589, 1.442695
        %v1619 = vpow.pop %v1618
        %v1620 = vmul.f32 %v1590, 1.442695
        %v1621 = vpow.pop %v1620
        %v1622 = vmul.f32 %v1591, 1.442695
        %v1623 = vpow.pop %v1622
        %v1624 = vadd.f32 %v1593, 1.0
        %v1625 = vadd.f32 %v1595, 1.0
        %v1626 = vadd.f32 %v1597, 1.0
        %v1627 = vadd.f32 %v1599, 1.0
        %v1628 = vadd.f32 %v1601, 1.0
        %v1629 = vadd.f32 %v1603, 1.0
        %v1630 = vadd.f32 %v1605, 1.0
        %v1631 = vadd.f32 %v1607, 1.0
        %v1632 = vadd.f32 %v1609, 1.0
        %v1633 = vadd.f32 %v1611, 1.0
        %v1634 = vadd.f32 %v1613, 1.0
        %v1635 = vadd.f32 %v1615, 1.0
        %v1636 = vadd.f32 %v1617, 1.0
        %v1637 = vadd.f32 %v1619, 1.0
        %v1638 = vadd.f32 %v1621, 1.0
        %v1639 = vadd.f32 %v1623, 1.0
        %v1640 = vrcp.pop %v1624
        %v1641 = vmul.f32 1.0, %v1640
        %v1642 = vrcp.pop %v1625
        %v1643 = vmul.f32 1.0, %v1642
        %v1644 = vrcp.pop %v1626
        %v1645 = vmul.f32 1.0, %v1644
        %v1646 = vrcp.pop %v1627
        %v1647 = vmul.f32 1.0, %v1646
        %v1648 = vrcp.pop %v1628
        %v1649 = vmul.f32 1.0, %v1648
        %v1650 = vrcp.pop %v1629
        %v1651 = vmul.f32 1.0, %v1650
        %v1652 = vrcp.pop %v1630
        %v1653 = vmul.f32 1.0, %v1652
        %v1654 = vrcp.pop %v1631
        %v1655 = vmul.f32 1.0, %v1654
        %v1656 = vrcp.pop %v1632
        %v1657 = vmul.f32 1.0, %v1656
        %v1658 = vrcp.pop %v1633
        %v1659 = vmul.f32 1.0, %v1658
        %v1660 = vrcp.pop %v1634
        %v1661 = vmul.f32 1.0, %v1660
        %v1662 = vrcp.pop %v1635
        %v1663 = vmul.f32 1.0, %v1662
        %v1664 = vrcp.pop %v1636
        %v1665 = vmul.f32 1.0, %v1664
        %v1666 = vrcp.pop %v1637
        %v1667 = vmul.f32 1.0, %v1666
        %v1668 = vrcp.pop %v1638
        %v1669 = vmul.f32 1.0, %v1668
        %v1670 = vrcp.pop %v1639
        %v1671 = vmul.f32 1.0, %v1670
        %1688 = vrot.lane.b32.xlu0 %v1498, 64
        %v1689 = vpop.permute.xlu0 %1688
        %1690 = vrot.lane.b32.xlu0 %v1501, 64
        %v1691 = vpop.permute.xlu0 %1690
        %1692 = vrot.lane.b32.xlu0 %v1506, 64
        %v1693 = vpop.permute.xlu0 %1692
        %1694 = vrot.lane.b32.xlu0 %v1509, 64
        %v1695 = vpop.permute.xlu0 %1694
        %1696 = vrot.lane.b32.xlu0 %v1514, 64
        %v1697 = vpop.permute.xlu0 %1696
        %1698 = vrot.lane.b32.xlu0 %v1517, 64
        %v1699 = vpop.permute.xlu0 %1698
        %1700 = vrot.lane.b32.xlu0 %v1522, 64
        %v1701 = vpop.permute.xlu0 %1700
        %1702 = vrot.lane.b32.xlu0 %v1525, 64
        %v1703 = vpop.permute.xlu0 %1702
        %1704 = vrot.lane.b32.xlu0 %v1530, 64
        %v1705 = vpop.permute.xlu0 %1704
        %1706 = vrot.lane.b32.xlu0 %v1533, 64
        %v1707 = vpop.permute.xlu0 %1706
        %1708 = vrot.lane.b32.xlu0 %v1538, 64
        %v1709 = vpop.permute.xlu0 %1708
        %1710 = vrot.lane.b32.xlu0 %v1541, 64
        %v1711 = vpop.permute.xlu0 %1710
        %1712 = vrot.lane.b32.xlu0 %v1546, 64
        %v1713 = vpop.permute.xlu0 %1712
        %1714 = vrot.lane.b32.xlu0 %v1549, 64
        %v1715 = vpop.permute.xlu0 %1714
        %1716 = vrot.lane.b32.xlu0 %v1554, 64
        %v1717 = vpop.permute.xlu0 %1716
        %1718 = vrot.lane.b32.xlu0 %v1557, 64
        %v1719 = vpop.permute.xlu0 %1718
        %v1736 = vmul.f32 %v1641, %v1689
        %v1737 = vmul.f32 %v1643, %v1691
        %v1738 = vmul.f32 %v1645, %v1693
        %v1739 = vmul.f32 %v1647, %v1695
        %v1740 = vmul.f32 %v1649, %v1697
        %v1741 = vmul.f32 %v1651, %v1699
        %v1742 = vmul.f32 %v1653, %v1701
        %v1743 = vmul.f32 %v1655, %v1703
        %v1744 = vmul.f32 %v1657, %v1705
        %v1745 = vmul.f32 %v1659, %v1707
        %v1746 = vmul.f32 %v1661, %v1709
        %v1747 = vmul.f32 %v1663, %v1711
        %v1748 = vmul.f32 %v1665, %v1713
        %v1749 = vmul.f32 %v1667, %v1715
        %v1750 = vmul.f32 %v1669, %v1717
        %v1751 = vmul.f32 %v1671, %v1719
        %1768 = vrot.lane.b32.xlu0 %v1736, 64
        %v1769 = vpop.permute.xlu0 %1768
        %1770 = vrot.lane.b32.xlu0 %v1737, 64
        %v1771 = vpop.permute.xlu0 %1770
        %1772 = vrot.lane.b32.xlu0 %v1738, 64
        %v1773 = vpop.permute.xlu0 %1772
        %1774 = vrot.lane.b32.xlu0 %v1739, 64
        %v1775 = vpop.permute.xlu0 %1774
        %1776 = vrot.lane.b32.xlu0 %v1740, 64
        %v1777 = vpop.permute.xlu0 %1776
        %1778 = vrot.lane.b32.xlu0 %v1741, 64
        %v1779 = vpop.permute.xlu0 %1778
        %1780 = vrot.lane.b32.xlu0 %v1742, 64
        %v1781 = vpop.permute.xlu0 %1780
        %1782 = vrot.lane.b32.xlu0 %v1743, 64
        %v1783 = vpop.permute.xlu0 %1782
        %1784 = vrot.lane.b32.xlu0 %v1744, 64
        %v1785 = vpop.permute.xlu0 %1784
        %1786 = vrot.lane.b32.xlu0 %v1745, 64
        %v1787 = vpop.permute.xlu0 %1786
        %1788 = vrot.lane.b32.xlu0 %v1746, 64
        %v1789 = vpop.permute.xlu0 %1788
        %1790 = vrot.lane.b32.xlu0 %v1747, 64
        %v1791 = vpop.permute.xlu0 %1790
        %1792 = vrot.lane.b32.xlu0 %v1748, 64
        %v1793 = vpop.permute.xlu0 %1792
        %1794 = vrot.lane.b32.xlu0 %v1749, 64
        %v1795 = vpop.permute.xlu0 %1794
        %1796 = vrot.lane.b32.xlu0 %v1750, 64
        %v1797 = vpop.permute.xlu0 %1796
        %1798 = vrot.lane.b32.xlu0 %v1751, 64
        %v1799 = vpop.permute.xlu0 %1798
        %v1816 = vadd.f32 %v1348, %v1769
        %v1817 = vadd.f32 %v1351, %v1771
        %v1818 = vadd.f32 %v1356, %v1773
        %v1819 = vadd.f32 %v1359, %v1775
        %v1820 = vadd.f32 %v1364, %v1777
        %v1821 = vadd.f32 %v1367, %v1779
        %v1822 = vadd.f32 %v1372, %v1781
        %v1823 = vadd.f32 %v1375, %v1783
        %v1824 = vadd.f32 %v1380, %v1785
        %v1825 = vadd.f32 %v1383, %v1787
        %v1826 = vadd.f32 %v1388, %v1789
        %v1827 = vadd.f32 %v1391, %v1791
        %v1828 = vadd.f32 %v1396, %v1793
        %v1829 = vadd.f32 %v1399, %v1795
        %v1830 = vadd.f32 %v1404, %v1797
        %v1831 = vadd.f32 %v1407, %v1799
        %v1832 = vtanh.pop %v1816
        %v1833 = vtanh.pop %v1817
        %v1834 = vtanh.pop %v1818
        %v1835 = vtanh.pop %v1819
        %v1836 = vtanh.pop %v1820
        %v1837 = vtanh.pop %v1821
        %v1838 = vtanh.pop %v1822
        %v1839 = vtanh.pop %v1823
        %v1840 = vtanh.pop %v1824
        %v1841 = vtanh.pop %v1825
        %v1842 = vtanh.pop %v1826
        %v1843 = vtanh.pop %v1827
        %v1844 = vtanh.pop %v1828
        %v1845 = vtanh.pop %v1829
        %v1846 = vtanh.pop %v1830
        %v1847 = vtanh.pop %v1831
        %v1848 = vsub.f32 1.0, %v1641
        %v1849 = vsub.f32 1.0, %v1643
        %v1850 = vsub.f32 1.0, %v1645
        %v1851 = vsub.f32 1.0, %v1647
        %v1852 = vsub.f32 1.0, %v1649
        %v1853 = vsub.f32 1.0, %v1651
        %v1854 = vsub.f32 1.0, %v1653
        %v1855 = vsub.f32 1.0, %v1655
        %v1856 = vsub.f32 1.0, %v1657
        %v1857 = vsub.f32 1.0, %v1659
        %v1858 = vsub.f32 1.0, %v1661
        %v1859 = vsub.f32 1.0, %v1663
        %v1860 = vsub.f32 1.0, %v1665
        %v1861 = vsub.f32 1.0, %v1667
        %v1862 = vsub.f32 1.0, %v1669
        %v1863 = vsub.f32 1.0, %v1671
        %1880 = vrot.lane.b32.xlu0 %v1832, 96
        %v1881 = vpop.permute.xlu0 %1880
        %1882 = vrot.lane.b32.xlu0 %v1833, 96
        %v1883 = vpop.permute.xlu0 %1882
        %1884 = vrot.lane.b32.xlu0 %v1834, 96
        %v1885 = vpop.permute.xlu0 %1884
        %1886 = vrot.lane.b32.xlu0 %v1835, 96
        %v1887 = vpop.permute.xlu0 %1886
        %1888 = vrot.lane.b32.xlu0 %v1836, 96
        %v1889 = vpop.permute.xlu0 %1888
        %1890 = vrot.lane.b32.xlu0 %v1837, 96
        %v1891 = vpop.permute.xlu0 %1890
        %1892 = vrot.lane.b32.xlu0 %v1838, 96
        %v1893 = vpop.permute.xlu0 %1892
        %1894 = vrot.lane.b32.xlu0 %v1839, 96
        %v1895 = vpop.permute.xlu0 %1894
        %1896 = vrot.lane.b32.xlu0 %v1840, 96
        %v1897 = vpop.permute.xlu0 %1896
        %1898 = vrot.lane.b32.xlu0 %v1841, 96
        %v1899 = vpop.permute.xlu0 %1898
        %1900 = vrot.lane.b32.xlu0 %v1842, 96
        %v1901 = vpop.permute.xlu0 %1900
        %1902 = vrot.lane.b32.xlu0 %v1843, 96
        %v1903 = vpop.permute.xlu0 %1902
        %1904 = vrot.lane.b32.xlu0 %v1844, 96
        %v1905 = vpop.permute.xlu0 %1904
        %1906 = vrot.lane.b32.xlu0 %v1845, 96
        %v1907 = vpop.permute.xlu0 %1906
        %1908 = vrot.lane.b32.xlu0 %v1846, 96
        %v1909 = vpop.permute.xlu0 %1908
        %1910 = vrot.lane.b32.xlu0 %v1847, 96
        %v1911 = vpop.permute.xlu0 %1910
        %v1928 = vmul.f32 %v1848, %v1881
        %v1929 = vmul.f32 %v1849, %v1883
        %v1930 = vmul.f32 %v1850, %v1885
        %v1931 = vmul.f32 %v1851, %v1887
        %v1932 = vmul.f32 %v1852, %v1889
        %v1933 = vmul.f32 %v1853, %v1891
        %v1934 = vmul.f32 %v1854, %v1893
        %v1935 = vmul.f32 %v1855, %v1895
        %v1936 = vmul.f32 %v1856, %v1897
        %v1937 = vmul.f32 %v1857, %v1899
        %v1938 = vmul.f32 %v1858, %v1901
        %v1939 = vmul.f32 %v1859, %v1903
        %v1940 = vmul.f32 %v1860, %v1905
        %v1941 = vmul.f32 %v1861, %v1907
        %v1942 = vmul.f32 %v1862, %v1909
        %v1943 = vmul.f32 %v1863, %v1911
        %1960 = vrot.lane.b32.xlu0 %v1228, 32
        %v1961 = vpop.permute.xlu0 %1960
        %1962 = vrot.lane.b32.xlu0 %v1229, 32
        %v1963 = vpop.permute.xlu0 %1962
        %1964 = vrot.lane.b32.xlu0 %v1230, 32
        %v1965 = vpop.permute.xlu0 %1964
        %1966 = vrot.lane.b32.xlu0 %v1231, 32
        %v1967 = vpop.permute.xlu0 %1966
        %1968 = vrot.lane.b32.xlu0 %v1232, 32
        %v1969 = vpop.permute.xlu0 %1968
        %1970 = vrot.lane.b32.xlu0 %v1233, 32
        %v1971 = vpop.permute.xlu0 %1970
        %1972 = vrot.lane.b32.xlu0 %v1234, 32
        %v1973 = vpop.permute.xlu0 %1972
        %1974 = vrot.lane.b32.xlu0 %v1235, 32
        %v1975 = vpop.permute.xlu0 %1974
        %1976 = vrot.lane.b32.xlu0 %v1236, 32
        %v1977 = vpop.permute.xlu0 %1976
        %1978 = vrot.lane.b32.xlu0 %v1237, 32
        %v1979 = vpop.permute.xlu0 %1978
        %1980 = vrot.lane.b32.xlu0 %v1238, 32
        %v1981 = vpop.permute.xlu0 %1980
        %1982 = vrot.lane.b32.xlu0 %v1239, 32
        %v1983 = vpop.permute.xlu0 %1982
        %1984 = vrot.lane.b32.xlu0 %v1240, 32
        %v1985 = vpop.permute.xlu0 %1984
        %1986 = vrot.lane.b32.xlu0 %v1241, 32
        %v1987 = vpop.permute.xlu0 %1986
        %1988 = vrot.lane.b32.xlu0 %v1242, 32
        %v1989 = vpop.permute.xlu0 %1988
        %1990 = vrot.lane.b32.xlu0 %v1243, 32
        %v1991 = vpop.permute.xlu0 %1990
        %v2008 = vmul.f32 %v1641, %v1961
        %v2009 = vmul.f32 %v1643, %v1963
        %v2010 = vmul.f32 %v1645, %v1965
        %v2011 = vmul.f32 %v1647, %v1967
        %v2012 = vmul.f32 %v1649, %v1969
        %v2013 = vmul.f32 %v1651, %v1971
        %v2014 = vmul.f32 %v1653, %v1973
        %v2015 = vmul.f32 %v1655, %v1975
        %v2016 = vmul.f32 %v1657, %v1977
        %v2017 = vmul.f32 %v1659, %v1979
        %v2018 = vmul.f32 %v1661, %v1981
        %v2019 = vmul.f32 %v1663, %v1983
        %v2020 = vmul.f32 %v1665, %v1985
        %v2021 = vmul.f32 %v1667, %v1987
        %v2022 = vmul.f32 %v1669, %v1989
        %v2023 = vmul.f32 %v1671, %v1991
        %v2024 = vadd.f32 %v1928, %v2008
        %v2025 = vadd.f32 %v1929, %v2009
        %v2026 = vadd.f32 %v1930, %v2010
        %v2027 = vadd.f32 %v1931, %v2011
        %v2028 = vadd.f32 %v1932, %v2012
        %v2029 = vadd.f32 %v1933, %v2013
        %v2030 = vadd.f32 %v1934, %v2014
        %v2031 = vadd.f32 %v1935, %v2015
        %v2032 = vadd.f32 %v1936, %v2016
        %v2033 = vadd.f32 %v1937, %v2017
        %v2034 = vadd.f32 %v1938, %v2018
        %v2035 = vadd.f32 %v1939, %v2019
        %v2036 = vadd.f32 %v1940, %v2020
        %v2037 = vadd.f32 %v1941, %v2021
        %v2038 = vadd.f32 %v1942, %v2022
        %v2039 = vadd.f32 %v1943, %v2023
        %v2040 = vpack.c.bf16 %v2025, %v2024
        %v2041 = vpack.c.bf16 %v2027, %v2026
        %v2042 = vpack.c.bf16 %v2029, %v2028
        %v2043 = vpack.c.bf16 %v2031, %v2030
        %v2044 = vpack.c.bf16 %v2033, %v2032
        %v2045 = vpack.c.bf16 %v2035, %v2034
        %v2046 = vpack.c.bf16 %v2037, %v2036
        %v2047 = vpack.c.bf16 %v2039, %v2038
        %v2048 = vld [vmem:[%s2 + $0x38] sm:$0xf]
        %v2049 = vld [vmem:[%s2 + $0x3c] sm:$0xf]
        %v2050 = vld [vmem:[%s2 + $0x40] sm:$0xf]
        %v2051 = vld [vmem:[%s2 + $0x44] sm:$0xf]
        %2060 = vrot.lane.b32.xlu0 %v2040, 96
        %v2061 = vpop.permute.xlu0 %2060
        %2062 = vrot.lane.b32.xlu0 %v2041, 96
        %v2063 = vpop.permute.xlu0 %2062
        %2064 = vrot.lane.b32.xlu0 %v2042, 96
        %v2065 = vpop.permute.xlu0 %2064
        %2066 = vrot.lane.b32.xlu0 %v2043, 96
        %v2067 = vpop.permute.xlu0 %2066
        %2068 = vrot.lane.b32.xlu0 %v2044, 96
        %v2069 = vpop.permute.xlu0 %2068
        %2070 = vrot.lane.b32.xlu0 %v2045, 96
        %v2071 = vpop.permute.xlu0 %2070
        %2072 = vrot.lane.b32.xlu0 %v2046, 96
        %v2073 = vpop.permute.xlu0 %2072
        %2074 = vrot.lane.b32.xlu0 %v2047, 96
        %v2075 = vpop.permute.xlu0 %2074
        %v2080 = vunpack.c.l.b16 %v2048
        %v2081 = vunpack.c.l.b16 %v2049
        %v2082 = vunpack.c.l.b16 %v2050
        %v2083 = vunpack.c.l.b16 %v2051
        %v2084 = vpack.c.b16 %v2081, %v2080
        %v2085 = vpack.c.b16 %v2083, %v2082
        %v2089 = vsel %vm617, %v2061, 0
        %v2092 = vsel %vm617, %v2063, 0
        %v2095 = vsel %vm617, %v2065, 0
        %v2098 = vsel %vm617, %v2067, 0
        %v2101 = vsel %vm617, %v2069, 0
        %v2104 = vsel %vm617, %v2071, 0
        %v2107 = vsel %vm617, %v2073, 0
        %v2110 = vsel %vm617, %v2075, 0
        %2112 = vmatprep.subr.bf16.mxu0 0
        %2113 = vmatpush1.bf16.msra.mxu0 0
        %2114 = vmatprep.subr.bf16.mxu0 0
        %2115 = vmatpush1.bf16.msra.mxu0 0
        %2116 = vmatprep.subr.bf16.mxu0 0
        %2117 = vmatpush1.bf16.msra.mxu0 0
        %2118 = vmatprep.subr.bf16.mxu0 0
        %2119 = vmatpush1.bf16.msra.mxu0 0
        %2120 = vmatprep.subr.bf16.mxu0 0
        %2121 = vmatpush1.bf16.msra.mxu0 0
        %2122 = vmatprep.subr.bf16.mxu0 0
        %2123 = vmatpush1.bf16.msra.mxu0 0
        %2124 = vmatprep.subr.bf16.mxu0 0
        %2125 = vmatpush1.bf16.msra.mxu0 %v2085
        %2126 = vmatprep.subr.bf16.mxu0 0
        %2127 = vmatpush1.bf16.msra.mxu0 %v2084
        %2128 = vmatprep.subr.bf16.mxu0 0
        %2129 = vmatpush2.bf16.msra.mxu0 0
        %2130 = vmatprep.subr.bf16.mxu0 0
        %2131 = vmatpush2.bf16.msra.mxu0 0
        %2132 = vmatprep.subr.bf16.mxu0 0
        %2133 = vmatpush2.bf16.msra.mxu0 0
        %2134 = vmatprep.subr.bf16.mxu0 0
        %2135 = vmatpush2.bf16.msra.mxu0 0
        %2136 = vmatprep.subr.bf16.mxu0 0
        %2137 = vmatpush2.bf16.msra.mxu0 0
        %2138 = vmatprep.subr.bf16.mxu0 0
        %2139 = vmatpush2.bf16.msra.mxu0 0
        %2140 = vmatprep.subr.bf16.mxu0 0
        %2141 = vmatpush2.bf16.msra.mxu0 0
        %2142 = vmatprep.subr.bf16.mxu0 0
        %2143 = vmatpush2.bf16.msra.mxu0 0
        %2144 = vmatprep.mubr.bf16.mxu0 0
        %2145 = vmatmul.mubr.bf16.gmra.mxu0 %v2089
        %v2146 = vpop.f32.mrf.mxu0
        %v2147 = vadd.f32 0.0, %v2146
        %v2148 = vpop.f32.mrf.mxu0
        %v2149 = vpop.f32.mrf.mxu0
        %v2150 = vadd.f32 0.0, %v2149
        %v2151 = vpop.f32.mrf.mxu0
        %2152 = vmatprep.mubr.bf16.mxu0 0
        %2153 = vmatmul.mubr.bf16.gmra.mxu0 %v2092
        %v2154 = vpop.f32.mrf.mxu0
        %v2155 = vadd.f32 0.0, %v2154
        %v2156 = vpop.f32.mrf.mxu0
        %v2157 = vpop.f32.mrf.mxu0
        %v2158 = vadd.f32 0.0, %v2157
        %v2159 = vpop.f32.mrf.mxu0
        %2160 = vmatprep.mubr.bf16.mxu0 0
        %2161 = vmatmul.mubr.bf16.gmra.mxu0 %v2095
        %v2162 = vpop.f32.mrf.mxu0
        %v2163 = vadd.f32 0.0, %v2162
        %v2164 = vpop.f32.mrf.mxu0
        %v2165 = vpop.f32.mrf.mxu0
        %v2166 = vadd.f32 0.0, %v2165
        %v2167 = vpop.f32.mrf.mxu0
        %2168 = vmatprep.mubr.bf16.mxu0 0
        %2169 = vmatmul.mubr.bf16.gmra.mxu0 %v2098
        %v2170 = vpop.f32.mrf.mxu0
        %v2171 = vadd.f32 0.0, %v2170
        %v2172 = vpop.f32.mrf.mxu0
        %v2173 = vpop.f32.mrf.mxu0
        %v2174 = vadd.f32 0.0, %v2173
        %v2175 = vpop.f32.mrf.mxu0
        %2176 = vmatprep.mubr.bf16.mxu0 0
        %2177 = vmatmul.mubr.bf16.gmra.mxu0 %v2101
        %v2178 = vpop.f32.mrf.mxu0
        %v2179 = vadd.f32 0.0, %v2178
        %v2180 = vpop.f32.mrf.mxu0
        %v2181 = vpop.f32.mrf.mxu0
        %v2182 = vadd.f32 0.0, %v2181
        %v2183 = vpop.f32.mrf.mxu0
        %2184 = vmatprep.mubr.bf16.mxu0 0
        %2185 = vmatmul.mubr.bf16.gmra.mxu0 %v2104
        %v2186 = vpop.f32.mrf.mxu0
        %v2187 = vadd.f32 0.0, %v2186
        %v2188 = vpop.f32.mrf.mxu0
        %v2189 = vpop.f32.mrf.mxu0
        %v2190 = vadd.f32 0.0, %v2189
        %v2191 = vpop.f32.mrf.mxu0
        %2192 = vmatprep.mubr.bf16.mxu0 0
        %2193 = vmatmul.mubr.bf16.gmra.mxu0 %v2107
        %v2194 = vpop.f32.mrf.mxu0
        %v2195 = vadd.f32 0.0, %v2194
        %v2196 = vpop.f32.mrf.mxu0
        %v2197 = vpop.f32.mrf.mxu0
        %v2198 = vadd.f32 0.0, %v2197
        %v2199 = vpop.f32.mrf.mxu0
        %2200 = vmatprep.mubr.bf16.mxu0 0
        %2201 = vmatmul.mubr.bf16.gmra.mxu0 %v2110
        %v2202 = vpop.f32.mrf.mxu0
        %v2203 = vadd.f32 0.0, %v2202
        %v2204 = vpop.f32.mrf.mxu0
        %v2205 = vpop.f32.mrf.mxu0
        %v2206 = vadd.f32 0.0, %v2205
        %v2207 = vpop.f32.mrf.mxu0
        %2208 = vdwg.mxu0
        %v2209 = vld [vmem:[%s3 + $0x20] sm:$0x1]
        %v2210 = vlaneseq
        %v2211 = vshrl.u32 %v2210, 7
        %v2212 = vsub.s32 0, %v2211
        %v2213 = vrot.slane %v2209, %v2212
        %v2214 = vadd.f32 %v2147, %v2213
        %v2215 = vadd.f32 %v2150, %v2213
        %v2216 = vadd.f32 %v2155, %v2213
        %v2217 = vadd.f32 %v2158, %v2213
        %v2218 = vadd.f32 %v2163, %v2213
        %v2219 = vadd.f32 %v2166, %v2213
        %v2220 = vadd.f32 %v2171, %v2213
        %v2221 = vadd.f32 %v2174, %v2213
        %v2222 = vadd.f32 %v2179, %v2213
        %v2223 = vadd.f32 %v2182, %v2213
        %v2224 = vadd.f32 %v2187, %v2213
        %v2225 = vadd.f32 %v2190, %v2213
        %v2226 = vadd.f32 %v2195, %v2213
        %v2227 = vadd.f32 %v2198, %v2213
        %v2228 = vadd.f32 %v2203, %v2213
        %v2229 = vadd.f32 %v2206, %v2213
        %v2230 = vmax.f32 %v2214, 0.0
        %v2231 = vmax.f32 %v2215, 0.0
        %v2232 = vmax.f32 %v2216, 0.0
        %v2233 = vmax.f32 %v2217, 0.0
        %v2234 = vmax.f32 %v2218, 0.0
        %v2235 = vmax.f32 %v2219, 0.0
        %v2236 = vmax.f32 %v2220, 0.0
        %v2237 = vmax.f32 %v2221, 0.0
        %v2238 = vmax.f32 %v2222, 0.0
        %v2239 = vmax.f32 %v2223, 0.0
        %v2240 = vmax.f32 %v2224, 0.0
        %v2241 = vmax.f32 %v2225, 0.0
        %v2242 = vmax.f32 %v2226, 0.0
        %v2243 = vmax.f32 %v2227, 0.0
        %v2244 = vmax.f32 %v2228, 0.0
        %v2245 = vmax.f32 %v2229, 0.0
        %v2246 = vpack.c.bf16 %v2231, %v2230
        %v2247 = vpack.c.bf16 %v2233, %v2232
        %v2248 = vpack.c.bf16 %v2235, %v2234
        %v2249 = vpack.c.bf16 %v2237, %v2236
        %v2250 = vpack.c.bf16 %v2239, %v2238
        %v2251 = vpack.c.bf16 %v2241, %v2240
        %v2252 = vpack.c.bf16 %v2243, %v2242
        %v2253 = vpack.c.bf16 %v2245, %v2244
        %v2254 = vld [vmem:[%s2 + $0x48] sm:$0xf]
        %v2255 = vld [vmem:[%s2 + $0x4c] sm:$0xf]
        %v2256 = vld [vmem:[%s2 + $0x50] sm:$0xf]
        %v2257 = vld [vmem:[%s2 + $0x54] sm:$0xf]
        %v2258 = vld [vmem:[%s3 + $0x28] sm:$0x1]
        %v2259 = vlaneseq
        %v2260 = vshrl.u32 %v2259, 7
        %v2261 = vsub.s32 0, %v2260
        %v2262 = vrot.slane %v2258, %v2261
        %v2267 = vunpack.c.l.b16 %v2254
        %v2268 = vunpack.c.l.b16 %v2255
        %v2269 = vunpack.c.l.b16 %v2256
        %v2270 = vunpack.c.l.b16 %v2257
        %v2271 = vpack.c.b16 %v2268, %v2267
        %v2272 = vpack.c.b16 %v2270, %v2269
        %v2276 = vsel %vm617, %v2246, 0
        %v2279 = vsel %vm617, %v2247, 0
        %v2282 = vsel %vm617, %v2248, 0
        %v2285 = vsel %vm617, %v2249, 0
        %v2288 = vsel %vm617, %v2250, 0
        %v2291 = vsel %vm617, %v2251, 0
        %v2294 = vsel %vm617, %v2252, 0
        %v2297 = vsel %vm617, %v2253, 0
        %2299 = vmatprep.subr.bf16.mxu0 0
        %2300 = vmatpush1.bf16.msra.mxu0 0
        %2301 = vmatprep.subr.bf16.mxu0 0
        %2302 = vmatpush1.bf16.msra.mxu0 0
        %2303 = vmatprep.subr.bf16.mxu0 0
        %2304 = vmatpush1.bf16.msra.mxu0 0
        %2305 = vmatprep.subr.bf16.mxu0 0
        %2306 = vmatpush1.bf16.msra.mxu0 0
        %2307 = vmatprep.subr.bf16.mxu0 0
        %2308 = vmatpush1.bf16.msra.mxu0 0
        %2309 = vmatprep.subr.bf16.mxu0 0
        %2310 = vmatpush1.bf16.msra.mxu0 0
        %2311 = vmatprep.subr.bf16.mxu0 0
        %2312 = vmatpush1.bf16.msra.mxu0 %v2272
        %2313 = vmatprep.subr.bf16.mxu0 0
        %2314 = vmatpush1.bf16.msra.mxu0 %v2271
        %2315 = vmatprep.subr.bf16.mxu0 0
        %2316 = vmatpush2.bf16.msra.mxu0 0
        %2317 = vmatprep.subr.bf16.mxu0 0
        %2318 = vmatpush2.bf16.msra.mxu0 0
        %2319 = vmatprep.subr.bf16.mxu0 0
        %2320 = vmatpush2.bf16.msra.mxu0 0
        %2321 = vmatprep.subr.bf16.mxu0 0
        %2322 = vmatpush2.bf16.msra.mxu0 0
        %2323 = vmatprep.subr.bf16.mxu0 0
        %2324 = vmatpush2.bf16.msra.mxu0 0
        %2325 = vmatprep.subr.bf16.mxu0 0
        %2326 = vmatpush2.bf16.msra.mxu0 0
        %2327 = vmatprep.subr.bf16.mxu0 0
        %2328 = vmatpush2.bf16.msra.mxu0 0
        %2329 = vmatprep.subr.bf16.mxu0 0
        %2330 = vmatpush2.bf16.msra.mxu0 0
        %2331 = vmatprep.mubr.bf16.mxu0 0
        %2332 = vmatmul.mubr.bf16.gmra.mxu0 %v2276
        %v2333 = vpop.f32.mrf.mxu0
        %v2334 = vadd.f32 %v2262, %v2333
        %v2335 = vpop.f32.mrf.mxu0
        %v2336 = vpop.f32.mrf.mxu0
        %v2337 = vadd.f32 %v2262, %v2336
        %v2338 = vpop.f32.mrf.mxu0
        %2339 = vmatprep.mubr.bf16.mxu0 0
        %2340 = vmatmul.mubr.bf16.gmra.mxu0 %v2279
        %v2341 = vpop.f32.mrf.mxu0
        %v2342 = vadd.f32 %v2262, %v2341
        %v2343 = vpop.f32.mrf.mxu0
        %v2344 = vpop.f32.mrf.mxu0
        %v2345 = vadd.f32 %v2262, %v2344
        %v2346 = vpop.f32.mrf.mxu0
        %2347 = vmatprep.mubr.bf16.mxu0 0
        %2348 = vmatmul.mubr.bf16.gmra.mxu0 %v2282
        %v2349 = vpop.f32.mrf.mxu0
        %v2350 = vadd.f32 %v2262, %v2349
        %v2351 = vpop.f32.mrf.mxu0
        %v2352 = vpop.f32.mrf.mxu0
        %v2353 = vadd.f32 %v2262, %v2352
        %v2354 = vpop.f32.mrf.mxu0
        %2355 = vmatprep.mubr.bf16.mxu0 0
        %2356 = vmatmul.mubr.bf16.gmra.mxu0 %v2285
        %v2357 = vpop.f32.mrf.mxu0
        %v2358 = vadd.f32 %v2262, %v2357
        %v2359 = vpop.f32.mrf.mxu0
        %v2360 = vpop.f32.mrf.mxu0
        %v2361 = vadd.f32 %v2262, %v2360
        %v2362 = vpop.f32.mrf.mxu0
        %2363 = vmatprep.mubr.bf16.mxu0 0
        %2364 = vmatmul.mubr.bf16.gmra.mxu0 %v2288
        %v2365 = vpop.f32.mrf.mxu0
        %v2366 = vadd.f32 %v2262, %v2365
        %v2367 = vpop.f32.mrf.mxu0
        %v2368 = vpop.f32.mrf.mxu0
        %v2369 = vadd.f32 %v2262, %v2368
        %v2370 = vpop.f32.mrf.mxu0
        %2371 = vmatprep.mubr.bf16.mxu0 0
        %2372 = vmatmul.mubr.bf16.gmra.mxu0 %v2291
        %v2373 = vpop.f32.mrf.mxu0
        %v2374 = vadd.f32 %v2262, %v2373
        %v2375 = vpop.f32.mrf.mxu0
        %v2376 = vpop.f32.mrf.mxu0
        %v2377 = vadd.f32 %v2262, %v2376
        %v2378 = vpop.f32.mrf.mxu0
        %2379 = vmatprep.mubr.bf16.mxu0 0
        %2380 = vmatmul.mubr.bf16.gmra.mxu0 %v2294
        %v2381 = vpop.f32.mrf.mxu0
        %v2382 = vadd.f32 %v2262, %v2381
        %v2383 = vpop.f32.mrf.mxu0
        %v2384 = vpop.f32.mrf.mxu0
        %v2385 = vadd.f32 %v2262, %v2384
        %v2386 = vpop.f32.mrf.mxu0
        %2387 = vmatprep.mubr.bf16.mxu0 0
        %2388 = vmatmul.mubr.bf16.gmra.mxu0 %v2297
        %v2389 = vpop.f32.mrf.mxu0
        %v2390 = vadd.f32 %v2262, %v2389
        %v2391 = vpop.f32.mrf.mxu0
        %v2392 = vpop.f32.mrf.mxu0
        %v2393 = vadd.f32 %v2262, %v2392
        %v2394 = vpop.f32.mrf.mxu0
        %2395 = vdwg.mxu0
        %2396 = vst [vmem:[%s371] sm:$0xff] %v2334
        %2397 = vst [vmem:[%s371 + $0x8] sm:$0xff] %v2337
        %2398 = vst [vmem:[%s371 + $0x10] sm:$0xff] %v2342
        %2399 = vst [vmem:[%s371 + $0x18] sm:$0xff] %v2345
        %2400 = vst [vmem:[%s371 + $0x20] sm:$0xff] %v2350
        %2401 = vst [vmem:[%s371 + $0x28] sm:$0xff] %v2353
        %2402 = vst [vmem:[%s371 + $0x30] sm:$0xff] %v2358
        %2403 = vst [vmem:[%s371 + $0x38] sm:$0xff] %v2361
        %2404 = vst [vmem:[%s371 + $0x40] sm:$0xff] %v2366
        %2405 = vst [vmem:[%s371 + $0x48] sm:$0xff] %v2369
        %2406 = vst [vmem:[%s371 + $0x50] sm:$0xff] %v2374
        %2407 = vst [vmem:[%s371 + $0x58] sm:$0xff] %v2377
        %2408 = vst [vmem:[%s371 + $0x60] sm:$0xff] %v2382
        %2409 = vst [vmem:[%s371 + $0x68] sm:$0xff] %v2385
        %2410 = vst [vmem:[%s371 + $0x70] sm:$0xff] %v2390
        %2411 = vst [vmem:[%s371 + $0x78] sm:$0xff] %v2393
        %s2412 = sand.u32 %s120, 1
        %s2413 = scalar_lea.sflag [#allocation4], %s2412
        %s2414 = sand.u32 %s120, 1
        %s2415 = smul.addr %s2414, 128
        %s2416 = scalar_lea.vmem [#allocation3], %s2415
        // Predicated region
        $region75: #{tpu_custom_call.1} parent=69 // pred_check
          %p2417 = pneg %p130
        $region76: #{tpu_custom_call.1} parent=69 // pred_check_branch
          %2419 = sbr.rel (%p2417) target = $region78
        $region77: #{tpu_custom_call.1} parent=69 // pred_region
          %s2420 = smul.u32 16, %s18
          %s2422 = ssub.s32 2048, 2048
          %2423 = vsyncadd %s2413, %s2422
          %s2424 = smul.addr %s2420, 128
          %s2425 = scalar_lea.hbm %s4, %s2424
          %s2426 = sshll.u32 %s2416, 4
          %s2427 = int_to_ptr.vmem [resolvable:$true] %s2426
          %2432 = dma.vmem_to_hbm [thread:$0]  %s2427, 2048, %s2425, %s2413, 128, 128, 8
        $region78: #{tpu_custom_call.1} parent=69 // pred_fallthru
          _
      $region70: #{tpu_custom_call.1} parent=5 // pred_fallthru
        _
      %p2433 = scmp.le.s32.totalorder 2, %s13
      // Predicated region
      $region79: #{tpu_custom_call.1} parent=5 // pred_check
        %p2434 = pneg %p2433
      $region80: #{tpu_custom_call.1} parent=5 // pred_check_branch
        %2436 = sbr.rel (%p2434) target = $region82
      $region81: #{tpu_custom_call.1} parent=5 // pred_region
        %s2437 = ssub.s32 %s13, 2
        // Predicated region
        $region83: #{tpu_custom_call.1} parent=81 // pred_check
          %p2438 = pneg %p136
        $region84: #{tpu_custom_call.1} parent=81 // pred_check_branch
          %2440 = sbr.rel (%p2438) target = $region86
        $region85: #{tpu_custom_call.1} parent=81 // pred_region
          %s2441 = sand.u32 %s121, 1
          %s2442 = scalar_lea.sflag [#allocation4], %s2441
          %s2443 = sand.u32 %s121, 1
          %s2444 = smul.addr %s2443, 128
          %s2445 = scalar_lea.vmem [#allocation3], %s2444
          %2446 = dma.done %s2442, 2048
        $region86: #{tpu_custom_call.1} parent=81 // pred_fallthru
          _
      $region82: #{tpu_custom_call.1} parent=5 // pred_fallthru
        _
    $region6: #{tpu_custom_call.1} parent=1 // loop_footer
      %s17 = sadd.s32 1, %s13
    $region7: #{tpu_custom_call.1} parent=1 // loop_footer_branch
      %12 = sbr.rel target = $region3
    $region8: #{tpu_custom_call.1} parent=1 // loop_exit
      _
    %2447 = vsyncpa [#allocation4], 1
    %s2448 = scalar_lea.sflag [#allocation4], 1
    %2449 = vsyncpa %s2448, 1

</llo_original>
